<compile_context>
chip_gen: v6e
topology: v6e:2x2x1
jax: 0.10.0
libtpu: 0.0.40
codegen_flags: <defaults>
</compile_context>

<pallas_src>
import math
import functools

import jax
import jax.numpy as jnp
from jax.experimental import pallas as pl
from jax.experimental.pallas import tpu as pltpu

EPS = 1e-5
LANE_WIDTH = 128  # target lane width per group (G samples * V nodes)


# ----------------------------------------------------------------------------
# Fused kernel: one lane group (G samples, G*V = 128 lanes) per grid step.
# Whole forward (input BN -> all graph-conv layers -> node-mean -> fc) in VMEM.
# ----------------------------------------------------------------------------
def fused_gcn_kernel(x_ref, aff_ref, w_ref, b_ref, adj_ref, avg_ref, fc_ref,
                     o_ref, *, layer_modes, c_pad):
    # x_ref  : (1, C_PAD, LANES) f32   group activations; lane = sample_in_group*V + node
    # aff_ref: (2, C_PAD, LANES) f32   folded eval-mode input-BN scale / shift
    # w_ref  : (NW, C_PAD, C_PAD) bf16 packed BN-folded conv (+ residual-conv) weights
    # b_ref  : (L, C_PAD, LANES) f32   packed per-(channel,node) biases (conv bias pushed
    #                                  through A, BN shift, residual-conv bias folded in)
    # adj_ref: (LANES, LANES) bf16     kron(I_G, A_hat)  -- fixed group block adjacency
    # avg_ref: (LANES, G) f32          kron(I_G, 1/V)    -- per-sample node averaging
    # fc_ref : (NCLS, C_PAD + 1) f32   [fc_w | fc_b]
    # o_ref  : (1, NCLS, G) f32        per-group logits (class-major; transposed in wrapper)

    x = x_ref[0] * aff_ref[0] + aff_ref[1]        # input BatchNorm (folded affine), f32
    a = adj_ref[...]                              # bf16 block adjacency, loaded once

    wi = 0
    for li, mode in enumerate(layer_modes):
        xb = x.astype(jnp.bfloat16)               # bf16 matmul operands, f32 accumulate
        w = w_ref[wi]
        wi += 1
        wx = jnp.dot(w, xb, preferred_element_type=jnp.float32)        # (C_PAD, LANES)
        h = jnp.dot(wx.astype(jnp.bfloat16), a,
                    preferred_element_type=jnp.float32)                # graph aggregation
        h = h + b_ref[li]                                              # all biases, f32
        if mode == "identity":
            h = h + x
        elif mode == "conv":
            wr = w_ref[wi]
            wi += 1
            h = h + jnp.dot(wr, xb, preferred_element_type=jnp.float32)
        x = jnp.maximum(h, 0.0)                                        # relu, f32

    # head: node mean via averaging matmul, then plain (NCLS,C_PAD)@(C_PAD,G) matmul.
    m = jnp.dot(x, avg_ref[...], preferred_element_type=jnp.float32)   # (C_PAD, G)
    fcw = fc_ref[:, :c_pad]
    fcb = fc_ref[:, c_pad:c_pad + 1]
    o_ref[0] = jnp.dot(fcw, m, preferred_element_type=jnp.float32) + fcb


# ----------------------------------------------------------------------------
# Host-side (one-time) BN folding and slab packing
# ----------------------------------------------------------------------------
def _fold_bn(gamma, beta, mean, var):
    s = gamma * jax.lax.rsqrt(var + EPS)
    t = beta - s * mean
    return s, t


def _pad2(m, rows, cols):
    out = jnp.zeros((rows, cols), jnp.float32)
    return out.at[:m.shape[0], :m.shape[1]].set(m)


def prepare_fused_params(x_shape, adj, in_bn, layers, fc_w, fc_b):
    """Fold all eval-mode BatchNorms into weights/biases and pack into dense slabs."""
    B, C0, V = x_shape
    G = max(1, LANE_WIDTH // V)        # samples per lane group  ->  G*V lanes
    lanes = G * V

    # uniform channel padding so every layer shares one (C_PAD, C_PAD) weight slot
    dims = []
    for p, _ in layers:
        cout, cin = p["W"].shape
        dims += [int(cout), int(cin)]
    c_pad = max([C0] + dims + [int(fc_w.shape[1])])
    c_pad = ((c_pad + 7) // 8) * 8

    # input BN -> per-(channel,node) affine, padded channels, tiled over the group lanes
    s0, t0 = _fold_bn(in_bn["gamma"], in_bn["beta"], in_bn["mean"], in_bn["var"])
    s0 = jnp.tile(_pad2(s0.reshape(C0, V), c_pad, V), (1, G))
    t0 = jnp.tile(_pad2(t0.reshape(C0, V), c_pad, V), (1, G))
    aff = jnp.stack([s0, t0])                                      # (2, c_pad, lanes)

    colsum = jnp.sum(adj, axis=0)                                  # (V,)

    w_list, b_list, modes = [], [], []
    for p, mode in layers:
        s, t = _fold_bn(p["gamma"], p["beta"], p["mean"], p["var"])
        w_f = s[:, None] * p["W"]                                  # BN scale into weight
        # conv bias pushed through the aggregation + BN shift
        bb = (s * p["b"])[:, None] * colsum[None, :] + t[:, None]  # (cout, V)
        w_list.append(_pad2(w_f, c_pad, c_pad))
        if mode == "conv":
            sr, tr = _fold_bn(p["res_gamma"], p["res_beta"],
                              p["res_mean"], p["res_var"])
            wr_f = sr[:, None] * p["res_W"]
            bb = bb + (sr * p["res_b"] + tr)[:, None]              # fold residual bias
            w_list.append(_pad2(wr_f, c_pad, c_pad))
        b_list.append(jnp.tile(_pad2(bb, c_pad, V), (1, G)))
        modes.append(mode)

    w_slab = jnp.stack(w_list).astype(jnp.bfloat16)                # (NW, c_pad, c_pad)
    b_slab = jnp.stack(b_list)                                     # (L, c_pad, lanes) f32

    # fixed group-level block adjacency / node averaging (size independent of B)
    ablk = jnp.kron(jnp.eye(G, dtype=jnp.float32), adj).astype(jnp.bfloat16)
    avgm = jnp.kron(jnp.eye(G, dtype=jnp.float32),
                    jnp.full((V, 1), 1.0 / V, jnp.float32))        # (lanes, G)

    fchead = jnp.concatenate(
        [_pad2(fc_w, fc_w.shape[0], c_pad), fc_b.reshape(-1, 1)], axis=1)

    return {"aff": aff, "w_slab": w_slab, "b_slab": b_slab, "ablk": ablk,
            "avgm": avgm, "fchead": fchead, "modes": tuple(modes),
            "c_pad": int(c_pad), "group": int(G)}


def _pack_input(x, c_pad, G):
    """Wrapper-side layout plumbing only: pad channels, fold G samples into lanes."""
    B, C0, V = x.shape
    ng = B // G
    xg = jnp.pad(x, ((0, 0), (0, c_pad - C0), (0, 0)))
    return xg.reshape(ng, G, c_pad, V).transpose(0, 2, 1, 3).reshape(ng, c_pad, G * V)


def gcn_forward_fused(x, params):
    aff, w_slab, b_slab = params["aff"], params["w_slab"], params["b_slab"]
    ablk, avgm, fchead = params["ablk"], params["avgm"], params["fchead"]
    modes, c_pad, G = params["modes"], params["c_pad"], params["group"]

    B, C0, V = x.shape
    # TODO(synk): pad the batch up to a multiple of the lane-group size when it isn't.
    assert B % G == 0, "batch must be a multiple of the lane-group size"
    ng = B // G
    lanes = G * V
    ncls = fchead.shape[0]
    nw = w_slab.shape[0]
    nl = b_slab.shape[0]

    xg = _pack_input(x, c_pad, G)

    kernel = functools.partial(fused_gcn_kernel, layer_modes=modes, c_pad=c_pad)
    out = pl.pallas_call(
        kernel,
        out_shape=jax.ShapeDtypeStruct((ng, ncls, G), jnp.float32),
        grid=(ng,),
        in_specs=[
            pl.BlockSpec((1, c_pad, lanes), lambda g: (g, 0, 0)),    # per-group x
            pl.BlockSpec((2, c_pad, lanes), lambda g: (0, 0, 0)),    # input-BN affine
            pl.BlockSpec((nw, c_pad, c_pad), lambda g: (0, 0, 0)),   # weight slab (bf16)
            pl.BlockSpec((nl, c_pad, lanes), lambda g: (0, 0, 0)),   # bias slab (f32)
            pl.BlockSpec((lanes, lanes), lambda g: (0, 0)),          # block adjacency
            pl.BlockSpec((lanes, G), lambda g: (0, 0)),              # node averaging
            pl.BlockSpec((ncls, c_pad + 1), lambda g: (0, 0)),       # fc head
        ],
        out_specs=pl.BlockSpec((1, ncls, G), lambda g: (g, 0, 0)),
        compiler_params=pltpu.CompilerParams(
            dimension_semantics=("parallel",)),       # both TensorCores on v7x
    )(xg, aff, w_slab, b_slab, ablk, avgm, fchead)

    return out.transpose(0, 2, 1).reshape(B, ncls)    # -> (B, num_classes)


# ----------------------------------------------------------------------------
# Deterministic parameter construction (mirrors GCN.__init__ layer schedule)
# ----------------------------------------------------------------------------
def make_layer_dims(feature_dim, num_layers, inner_feature_dim):
    dims = [(feature_dim, inner_feature_dim)]         # first layer: residual=False
    inner = inner_feature_dim
    k = 0
    for _ in range(1, num_layers):
        k += 1
        in_dim = inner
        if k == 3:
            inner *= 2
            k = 0
        dims.append((in_dim, inner))
    return dims, inner


def init_bn(key, dim):
    k1, k2, k3, k4 = jax.random.split(key, 4)
    return {
        "gamma": jax.random.uniform(k1, (dim,), jnp.float32, 0.8, 1.2),
        "beta": 0.1 * jax.random.normal(k2, (dim,), jnp.float32),
        "mean": 0.1 * jax.random.normal(k3, (dim,), jnp.float32),
        "var": jax.random.uniform(k4, (dim,), jnp.float32, 0.5, 1.5),
    }


def init_params(key, feature_dim, num_nodes, num_layers,
                inner_feature_dim, num_classes):
    dims, final_dim = make_layer_dims(feature_dim, num_layers, inner_feature_dim)
    keys = jax.random.split(key, 3 + len(dims))

    in_bn = init_bn(keys[0], feature_dim * num_nodes)

    layers = []
    for li, (cin, cout) in enumerate(dims):
        lk = jax.random.split(keys[1 + li], 4)
        p = {
            "W": jax.random.normal(lk[0], (cout, cin), jnp.float32)
                 * math.sqrt(2.0 / cin),
            "b": 0.01 * jax.random.normal(lk[1], (cout,), jnp.float32),
        }
        p.update(init_bn(lk[2], cout))
        if li == 0:
            mode = "none"                              # residual=False for first layer
        elif cin == cout:
            mode = "identity"
        else:
            mode = "conv"
            rk = jax.random.split(lk[3], 3)
            p["res_W"] = jax.random.normal(rk[0], (cout, cin), jnp.float32) \
                         * math.sqrt(2.0 / cin)
            p["res_b"] = 0.01 * jax.random.normal(rk[1], (cout,), jnp.float32)
            rbn = init_bn(rk[2], cout)
            p["res_gamma"], p["res_beta"] = rbn["gamma"], rbn["beta"]
            p["res_mean"], p["res_var"] = rbn["mean"], rbn["var"]
        layers.append((p, mode))

    fk1, fk2 = jax.random.split(keys[-1], 2)
    fc_w = jax.random.normal(fk1, (num_classes, final_dim), jnp.float32) \
           * math.sqrt(2.0 / num_classes)
    fc_b = 0.01 * jax.random.normal(fk2, (num_classes,), jnp.float32)

    return in_bn, layers, fc_w, fc_b


def make_adjacency(num_nodes):
    # Deterministic ring graph + self loops, symmetrically normalized.
    idx = jnp.arange(num_nodes)
    a = jnp.zeros((num_nodes, num_nodes), jnp.float32)
    a = a.at[idx, (idx + 1) % num_nodes].set(1.0)
    a = a.at[(idx + 1) % num_nodes, idx].set(1.0)
    a = a + jnp.eye(num_nodes, dtype=jnp.float32)
    d = jnp.sum(a, axis=1)
    dinv = 1.0 / jnp.sqrt(d)
    return a * dinv[:, None] * dinv[None, :]


# ----------------------------------------------------------------------------
# References for correctness checks
# ----------------------------------------------------------------------------
def gcn_reference(x, adj, in_bn, layers, fc_w, fc_b):
    """Un-folded, full-f32 reference of the original module (eval mode)."""
    B, C, V = x.shape
    xf = x.reshape(B, C * V)
    xf = (xf - in_bn["mean"]) * jax.lax.rsqrt(in_bn["var"] + EPS) \
         * in_bn["gamma"] + in_bn["beta"]
    h = xf.reshape(B, C, V)
    for p, mode in layers:
        y = jnp.einsum("oc,bcv->bov", p["W"], h) + p["b"][None, :, None]
        z = jnp.einsum("bov,vw->bow", y, adj)
        s = p["gamma"] * jax.lax.rsqrt(p["var"] + EPS)
        z = (z - p["mean"][None, :, None]) * s[None, :, None] + p["beta"][None, :, None]
        if mode == "identity":
            z = z + h
        elif mode == "conv":
            r = jnp.einsum("oc,bcv->bov", p["res_W"], h) + p["res_b"][None, :, None]
            sr = p["res_gamma"] * jax.lax.rsqrt(p["res_var"] + EPS)
            r = (r - p["res_mean"][None, :, None]) * sr[None, :, None] \
                + p["res_beta"][None, :, None]
            z = z + r
        h = jnp.maximum(z, 0.0)
    return h.mean(-1) @ fc_w.T + fc_b


def folded_bf16_reference(xg, params):
    """Pure-JAX twin of the kernel math (same folded bf16 slabs) for a tight check."""
    aff, w_slab, b_slab = params["aff"], params["w_slab"], params["b_slab"]
    ablk, avgm, fchead = params["ablk"], params["avgm"], params["fchead"]
    modes, c_pad = params["modes"], params["c_pad"]
    outs = []
    for g in range(xg.shape[0]):
        x = xg[g] * aff[0] + aff[1]
        wi = 0
        for li, mode in enumerate(modes):
            xb = x.astype(jnp.bfloat16)
            w = w_slab[wi]; wi += 1
            wx = jnp.dot(w, xb, preferred_element_type=jnp.float32)
            h = jnp.dot(wx.astype(jnp.bfloat16), ablk,
                        preferred_element_type=jnp.float32) + b_slab[li]
            if mode == "identity":
                h = h + x
            elif mode == "conv":
                wr = w_slab[wi]; wi += 1
                h = h + jnp.dot(wr, xb, preferred_element_type=jnp.float32)
            x = jnp.maximum(h, 0.0)
        m = jnp.dot(x, avgm, preferred_element_type=jnp.float32)
        logits = jnp.dot(fchead[:, :c_pad], m,
                         preferred_element_type=jnp.float32) + fchead[:, c_pad:]
        outs.append(logits.T)                   # (G, NCLS)
    return jnp.concatenate(outs, axis=0)        # (B, NCLS)


if __name__ == "__main__":
    # Small shapes consistent with GCN(data_shape=(feature_dim, num_nodes), ...);
    # batch=16 = 2 lane groups of 8 samples (8 * 16 nodes = 128 lanes per group).
    batch = 16
    feature_dim = 4
    num_nodes = 16
    num_layers = 4            # >= 2 as asserted in the module
    inner_feature_dim = 32
    num_classes = 8

    key = jax.random.PRNGKey(0)
    k_x, k_p = jax.random.split(key)

    x = jax.random.normal(k_x, (batch, feature_dim, num_nodes), jnp.float32)
    adj = make_adjacency(num_nodes)
    in_bn, layers, fc_w, fc_b = init_params(
        k_p, feature_dim, num_nodes, num_layers, inner_feature_dim, num_classes)

    # One-time folding/packing of parameters for the fused kernel.
    params = prepare_fused_params(x.shape, adj, in_bn, layers, fc_w, fc_b)

    out = jax.block_until_ready(gcn_forward_fused(x, params))
    assert out.shape == (batch, num_classes), out.shape
    assert bool(jnp.all(jnp.isfinite(out)))

    # (1) Tight check: kernel vs a pure-JAX twin computing the identical folded/bf16 math.
    xg = _pack_input(x, params["c_pad"], params["group"])
    ref_folded = jax.block_until_ready(folded_bf16_reference(xg, params))
    sc_f = float(jnp.maximum(1.0, jnp.max(jnp.abs(ref_folded))))
    assert float(jnp.max(jnp.abs(out - ref_folded))) < 5e-3 * sc_f

    # (2) Looser check vs the un-folded f32 reference (bf16 matmul operands, BN folding,
    #     and matmul reassociation change rounding).
    ref = jax.block_until_ready(gcn_reference(x, adj, in_bn, layers, fc_w, fc_b))
    sc = float(jnp.maximum(1.0, jnp.max(jnp.abs(ref))))
    assert float(jnp.max(jnp.abs(out - ref))) < 1e-1 * sc

    print("KERNEL_OK")
</pallas_src>

<mosaic_0001>
module attributes {stable_mosaic.version = 11 : i64} {
  func.func @fused_gcn_kernel(%arg0: i32, %arg1: memref<1x64x128xf32, #tpu.memory_space<vmem>>, %arg2: memref<2x64x128xf32, #tpu.memory_space<vmem>>, %arg3: memref<5x64x64xbf16, #tpu.memory_space<vmem>>, %arg4: memref<4x64x128xf32, #tpu.memory_space<vmem>>, %arg5: memref<128x128xbf16, #tpu.memory_space<vmem>>, %arg6: memref<128x8xf32, #tpu.memory_space<vmem>>, %arg7: memref<8x65xf32, #tpu.memory_space<vmem>>, %arg8: memref<1x8x8xf32, #tpu.memory_space<vmem>>) attributes {dimension_semantics = [#tpu.dimension_semantics<parallel>], iteration_bounds = array<i64: 2>, scalar_prefetch = 0 : i64, scratch_operands = 0 : i64, tpu.core_type = #tpu.core_type<tc>, window_params = [{transform_indices = @transform_0, window_bounds = array<i64: 1, 64, 128>}, {pipeline_mode = #tpu.pipeline_mode<synchronous>, transform_indices = @transform_1, window_bounds = array<i64: 2, 64, 128>}, {pipeline_mode = #tpu.pipeline_mode<synchronous>, transform_indices = @transform_2, window_bounds = array<i64: 5, 64, 64>}, {pipeline_mode = #tpu.pipeline_mode<synchronous>, transform_indices = @transform_3, window_bounds = array<i64: 4, 64, 128>}, {pipeline_mode = #tpu.pipeline_mode<synchronous>, transform_indices = @transform_4, window_bounds = array<i64: 128, 128>}, {pipeline_mode = #tpu.pipeline_mode<synchronous>, transform_indices = @transform_5, window_bounds = array<i64: 128, 8>}, {pipeline_mode = #tpu.pipeline_mode<synchronous>, transform_indices = @transform_6, window_bounds = array<i64: 8, 65>}, {transform_indices = @transform_7, window_bounds = array<i64: 1, 8, 8>}]} {
    %c0 = arith.constant 0 : index
    %c0_0 = arith.constant 0 : index
    %c0_1 = arith.constant 0 : index
    %0 = vector.load %arg1[%c0, %c0_0, %c0_1] : memref<1x64x128xf32, #tpu.memory_space<vmem>>, vector<1x64x128xf32>
    %1 = vector.shape_cast %0 : vector<1x64x128xf32> to vector<64x128xf32>
    %c0_2 = arith.constant 0 : index
    %c0_3 = arith.constant 0 : index
    %c0_4 = arith.constant 0 : index
    %2 = vector.load %arg2[%c0_2, %c0_3, %c0_4] : memref<2x64x128xf32, #tpu.memory_space<vmem>>, vector<1x64x128xf32>
    %3 = vector.shape_cast %2 : vector<1x64x128xf32> to vector<64x128xf32>
    %4 = arith.mulf %1, %3 : vector<64x128xf32>
    %c1 = arith.constant 1 : index
    %c0_5 = arith.constant 0 : index
    %c0_6 = arith.constant 0 : index
    %5 = vector.load %arg2[%c1, %c0_5, %c0_6] : memref<2x64x128xf32, #tpu.memory_space<vmem>>, vector<1x64x128xf32>
    %6 = vector.shape_cast %5 : vector<1x64x128xf32> to vector<64x128xf32>
    %7 = arith.addf %4, %6 : vector<64x128xf32>
    %c0_7 = arith.constant 0 : index
    %c0_8 = arith.constant 0 : index
    %8 = vector.load %arg5[%c0_7, %c0_8] : memref<128x128xbf16, #tpu.memory_space<vmem>>, vector<128x128xbf16>
    %9 = arith.truncf %7 : vector<64x128xf32> to vector<64x128xbf16>
    %c0_9 = arith.constant 0 : index
    %c0_10 = arith.constant 0 : index
    %c0_11 = arith.constant 0 : index
    %10 = vector.load %arg3[%c0_9, %c0_10, %c0_11] : memref<5x64x64xbf16, #tpu.memory_space<vmem>>, vector<1x64x64xbf16>
    %11 = vector.shape_cast %10 : vector<1x64x64xbf16> to vector<64x64xbf16>
    %cst = arith.constant dense<0.000000e+00> : vector<64x128xf32>
    %12 = tpu.matmul %11, %9, %cst {dimension_numbers = #tpu.dot_dimension_numbers<[1], [0], [0], [1], [0, 0, 1, 1], [], []>} : vector<64x64xbf16>, vector<64x128xbf16>, vector<64x128xf32> -> vector<64x128xf32>
    %13 = arith.truncf %12 : vector<64x128xf32> to vector<64x128xbf16>
    %cst_12 = arith.constant dense<0.000000e+00> : vector<64x128xf32>
    %14 = tpu.matmul %13, %8, %cst_12 {dimension_numbers = #tpu.dot_dimension_numbers<[1], [0], [0], [1], [0, 0, 1, 1], [], []>} : vector<64x128xbf16>, vector<128x128xbf16>, vector<64x128xf32> -> vector<64x128xf32>
    %c0_13 = arith.constant 0 : index
    %c0_14 = arith.constant 0 : index
    %c0_15 = arith.constant 0 : index
    %15 = vector.load %arg4[%c0_13, %c0_14, %c0_15] : memref<4x64x128xf32, #tpu.memory_space<vmem>>, vector<1x64x128xf32>
    %16 = vector.shape_cast %15 : vector<1x64x128xf32> to vector<64x128xf32>
    %17 = arith.addf %14, %16 : vector<64x128xf32>
    %cst_16 = arith.constant 0.000000e+00 : f32
    %18 = vector.broadcast %cst_16 : f32 to vector<64x128xf32>
    %19 = arith.maximumf %17, %18 : vector<64x128xf32>
    %20 = arith.truncf %19 : vector<64x128xf32> to vector<64x128xbf16>
    %c1_17 = arith.constant 1 : index
    %c0_18 = arith.constant 0 : index
    %c0_19 = arith.constant 0 : index
    %21 = vector.load %arg3[%c1_17, %c0_18, %c0_19] : memref<5x64x64xbf16, #tpu.memory_space<vmem>>, vector<1x64x64xbf16>
    %22 = vector.shape_cast %21 : vector<1x64x64xbf16> to vector<64x64xbf16>
    %cst_20 = arith.constant dense<0.000000e+00> : vector<64x128xf32>
    %23 = tpu.matmul %22, %20, %cst_20 {dimension_numbers = #tpu.dot_dimension_numbers<[1], [0], [0], [1], [0, 0, 1, 1], [], []>} : vector<64x64xbf16>, vector<64x128xbf16>, vector<64x128xf32> -> vector<64x128xf32>
    %24 = arith.truncf %23 : vector<64x128xf32> to vector<64x128xbf16>
    %cst_21 = arith.constant dense<0.000000e+00> : vector<64x128xf32>
    %25 = tpu.matmul %24, %8, %cst_21 {dimension_numbers = #tpu.dot_dimension_numbers<[1], [0], [0], [1], [0, 0, 1, 1], [], []>} : vector<64x128xbf16>, vector<128x128xbf16>, vector<64x128xf32> -> vector<64x128xf32>
    %c1_22 = arith.constant 1 : index
    %c0_23 = arith.constant 0 : index
    %c0_24 = arith.constant 0 : index
    %26 = vector.load %arg4[%c1_22, %c0_23, %c0_24] : memref<4x64x128xf32, #tpu.memory_space<vmem>>, vector<1x64x128xf32>
    %27 = vector.shape_cast %26 : vector<1x64x128xf32> to vector<64x128xf32>
    %28 = arith.addf %25, %27 : vector<64x128xf32>
    %29 = arith.addf %28, %19 : vector<64x128xf32>
    %cst_25 = arith.constant 0.000000e+00 : f32
    %30 = vector.broadcast %cst_25 : f32 to vector<64x128xf32>
    %31 = arith.maximumf %29, %30 : vector<64x128xf32>
    %32 = arith.truncf %31 : vector<64x128xf32> to vector<64x128xbf16>
    %c2 = arith.constant 2 : index
    %c0_26 = arith.constant 0 : index
    %c0_27 = arith.constant 0 : index
    %33 = vector.load %arg3[%c2, %c0_26, %c0_27] : memref<5x64x64xbf16, #tpu.memory_space<vmem>>, vector<1x64x64xbf16>
    %34 = vector.shape_cast %33 : vector<1x64x64xbf16> to vector<64x64xbf16>
    %cst_28 = arith.constant dense<0.000000e+00> : vector<64x128xf32>
    %35 = tpu.matmul %34, %32, %cst_28 {dimension_numbers = #tpu.dot_dimension_numbers<[1], [0], [0], [1], [0, 0, 1, 1], [], []>} : vector<64x64xbf16>, vector<64x128xbf16>, vector<64x128xf32> -> vector<64x128xf32>
    %36 = arith.truncf %35 : vector<64x128xf32> to vector<64x128xbf16>
    %cst_29 = arith.constant dense<0.000000e+00> : vector<64x128xf32>
    %37 = tpu.matmul %36, %8, %cst_29 {dimension_numbers = #tpu.dot_dimension_numbers<[1], [0], [0], [1], [0, 0, 1, 1], [], []>} : vector<64x128xbf16>, vector<128x128xbf16>, vector<64x128xf32> -> vector<64x128xf32>
    %c2_30 = arith.constant 2 : index
    %c0_31 = arith.constant 0 : index
    %c0_32 = arith.constant 0 : index
    %38 = vector.load %arg4[%c2_30, %c0_31, %c0_32] : memref<4x64x128xf32, #tpu.memory_space<vmem>>, vector<1x64x128xf32>
    %39 = vector.shape_cast %38 : vector<1x64x128xf32> to vector<64x128xf32>
    %40 = arith.addf %37, %39 : vector<64x128xf32>
    %41 = arith.addf %40, %31 : vector<64x128xf32>
    %cst_33 = arith.constant 0.000000e+00 : f32
    %42 = vector.broadcast %cst_33 : f32 to vector<64x128xf32>
    %43 = arith.maximumf %41, %42 : vector<64x128xf32>
    %44 = arith.truncf %43 : vector<64x128xf32> to vector<64x128xbf16>
    %c3 = arith.constant 3 : index
    %c0_34 = arith.constant 0 : index
    %c0_35 = arith.constant 0 : index
    %45 = vector.load %arg3[%c3, %c0_34, %c0_35] : memref<5x64x64xbf16, #tpu.memory_space<vmem>>, vector<1x64x64xbf16>
    %46 = vector.shape_cast %45 : vector<1x64x64xbf16> to vector<64x64xbf16>
    %cst_36 = arith.constant dense<0.000000e+00> : vector<64x128xf32>
    %47 = tpu.matmul %46, %44, %cst_36 {dimension_numbers = #tpu.dot_dimension_numbers<[1], [0], [0], [1], [0, 0, 1, 1], [], []>} : vector<64x64xbf16>, vector<64x128xbf16>, vector<64x128xf32> -> vector<64x128xf32>
    %48 = arith.truncf %47 : vector<64x128xf32> to vector<64x128xbf16>
    %cst_37 = arith.constant dense<0.000000e+00> : vector<64x128xf32>
    %49 = tpu.matmul %48, %8, %cst_37 {dimension_numbers = #tpu.dot_dimension_numbers<[1], [0], [0], [1], [0, 0, 1, 1], [], []>} : vector<64x128xbf16>, vector<128x128xbf16>, vector<64x128xf32> -> vector<64x128xf32>
    %c3_38 = arith.constant 3 : index
    %c0_39 = arith.constant 0 : index
    %c0_40 = arith.constant 0 : index
    %50 = vector.load %arg4[%c3_38, %c0_39, %c0_40] : memref<4x64x128xf32, #tpu.memory_space<vmem>>, vector<1x64x128xf32>
    %51 = vector.shape_cast %50 : vector<1x64x128xf32> to vector<64x128xf32>
    %52 = arith.addf %49, %51 : vector<64x128xf32>
    %c4 = arith.constant 4 : index
    %c0_41 = arith.constant 0 : index
    %c0_42 = arith.constant 0 : index
    %53 = vector.load %arg3[%c4, %c0_41, %c0_42] : memref<5x64x64xbf16, #tpu.memory_space<vmem>>, vector<1x64x64xbf16>
    %54 = vector.shape_cast %53 : vector<1x64x64xbf16> to vector<64x64xbf16>
    %cst_43 = arith.constant dense<0.000000e+00> : vector<64x128xf32>
    %55 = tpu.matmul %54, %44, %cst_43 {dimension_numbers = #tpu.dot_dimension_numbers<[1], [0], [0], [1], [0, 0, 1, 1], [], []>} : vector<64x64xbf16>, vector<64x128xbf16>, vector<64x128xf32> -> vector<64x128xf32>
    %56 = arith.addf %52, %55 : vector<64x128xf32>
    %cst_44 = arith.constant 0.000000e+00 : f32
    %57 = vector.broadcast %cst_44 : f32 to vector<64x128xf32>
    %58 = arith.maximumf %56, %57 : vector<64x128xf32>
    %c0_45 = arith.constant 0 : index
    %c0_46 = arith.constant 0 : index
    %59 = vector.load %arg6[%c0_45, %c0_46] : memref<128x8xf32, #tpu.memory_space<vmem>>, vector<128x8xf32>
    %cst_47 = arith.constant dense<0.000000e+00> : vector<64x8xf32>
    %60 = tpu.matmul %58, %59, %cst_47 {dimension_numbers = #tpu.dot_dimension_numbers<[1], [0], [0], [1], [0, 0, 1, 1], [], []>} : vector<64x128xf32>, vector<128x8xf32>, vector<64x8xf32> -> vector<64x8xf32>
    %c0_48 = arith.constant 0 : index
    %c0_49 = arith.constant 0 : index
    %61 = vector.load %arg7[%c0_48, %c0_49] : memref<8x65xf32, #tpu.memory_space<vmem>>, vector<8x64xf32>
    %c0_50 = arith.constant 0 : index
    %c64 = arith.constant 64 : index
    %62 = vector.load %arg7[%c0_50, %c64] : memref<8x65xf32, #tpu.memory_space<vmem>>, vector<8x1xf32>
    %cst_51 = arith.constant dense<0.000000e+00> : vector<8x8xf32>
    %63 = tpu.matmul %61, %60, %cst_51 {dimension_numbers = #tpu.dot_dimension_numbers<[1], [0], [0], [1], [0, 0, 1, 1], [], []>} : vector<8x64xf32>, vector<64x8xf32>, vector<8x8xf32> -> vector<8x8xf32>
    %64 = vector.broadcast %62 : vector<8x1xf32> to vector<8x8xf32>
    %65 = arith.addf %63, %64 : vector<8x8xf32>
    %c0_52 = arith.constant 0 : index
    %c0_53 = arith.constant 0 : index
    %c0_54 = arith.constant 0 : index
    %66 = vector.load %arg8[%c0_52, %c0_53, %c0_54] : memref<1x8x8xf32, #tpu.memory_space<vmem>>, vector<1x8x8xf32>
    %67 = vector.shape_cast %66 : vector<1x8x8xf32> to vector<8x8xf32>
    %68 = vector.shape_cast %65 : vector<8x8xf32> to vector<1x8x8xf32>
    tpu.vector_store %arg8[%c0_52, %c0_53, %c0_54], %68 {strides = array<i32>} : memref<1x8x8xf32, #tpu.memory_space<vmem>>, vector<1x8x8xf32>,
    return
  }
  func.func @transform_0(%arg0: i32) -> (i32, i32, i32) {
    %c0_i32 = arith.constant 0 : i32
    %c0_i32_0 = arith.constant 0 : i32
    %c0_i32_1 = arith.constant 0 : i32
    return %arg0, %c0_i32, %c0_i32_0 : i32, i32, i32
  }
  func.func @transform_1(%arg0: i32) -> (i32, i32, i32) {
    %c0_i32 = arith.constant 0 : i32
    %c0_i32_0 = arith.constant 0 : i32
    %c0_i32_1 = arith.constant 0 : i32
    %c0_i32_2 = arith.constant 0 : i32
    return %c0_i32, %c0_i32_0, %c0_i32_1 : i32, i32, i32
  }
  func.func @transform_2(%arg0: i32) -> (i32, i32, i32) {
    %c0_i32 = arith.constant 0 : i32
    %c0_i32_0 = arith.constant 0 : i32
    %c0_i32_1 = arith.constant 0 : i32
    %c0_i32_2 = arith.constant 0 : i32
    return %c0_i32, %c0_i32_0, %c0_i32_1 : i32, i32, i32
  }
  func.func @transform_3(%arg0: i32) -> (i32, i32, i32) {
    %c0_i32 = arith.constant 0 : i32
    %c0_i32_0 = arith.constant 0 : i32
    %c0_i32_1 = arith.constant 0 : i32
    %c0_i32_2 = arith.constant 0 : i32
    return %c0_i32, %c0_i32_0, %c0_i32_1 : i32, i32, i32
  }
  func.func @transform_4(%arg0: i32) -> (i32, i32) {
    %c0_i32 = arith.constant 0 : i32
    %c0_i32_0 = arith.constant 0 : i32
    %c0_i32_1 = arith.constant 0 : i32
    return %c0_i32, %c0_i32_0 : i32, i32
  }
  func.func @transform_5(%arg0: i32) -> (i32, i32) {
    %c0_i32 = arith.constant 0 : i32
    %c0_i32_0 = arith.constant 0 : i32
    %c0_i32_1 = arith.constant 0 : i32
    return %c0_i32, %c0_i32_0 : i32, i32
  }
  func.func @transform_6(%arg0: i32) -> (i32, i32) {
    %c0_i32 = arith.constant 0 : i32
    %c0_i32_0 = arith.constant 0 : i32
    %c0_i32_1 = arith.constant 0 : i32
    return %c0_i32, %c0_i32_0 : i32, i32
  }
  func.func @transform_7(%arg0: i32) -> (i32, i32, i32) {
    %c0_i32 = arith.constant 0 : i32
    %c0_i32_0 = arith.constant 0 : i32
    %c0_i32_1 = arith.constant 0 : i32
    return %arg0, %c0_i32, %c0_i32_0 : i32, i32, i32
  }
}

</mosaic_0001>

<llo_original>
// kernel: tpu_custom_call.1
$region0: #{tpu_custom_call.1}
  #allocation0 [shape = 'u32[]', space=smem, size = 0x4, offset = 0x4, fixed_abs, tag = 'smem constant byte address 0x4 - core index']
  #allocation1 [shape = 'u32[144,128]{1,0:T(1,128)}', space=vmem, size = 0x12000, scoped, tag = 'internal scratch']
  %s0 = inlined_call_operand.vmem [shape: f32[2,64,128], index: 0, kind: input, shape index: {}]
  %s1 = inlined_call_operand.hbm [shape: f32[2,64,128], index: 1, kind: input, shape index: {}]
  %s2 = inlined_call_operand.hbm [shape: bf16[5,64,64], index: 2, kind: input, shape index: {}]
  %s3 = inlined_call_operand.hbm [shape: f32[4,64,128], index: 3, kind: input, shape index: {}]
  %s4 = inlined_call_operand.hbm [shape: bf16[128,128], index: 4, kind: input, shape index: {}]
  %s5 = inlined_call_operand.vmem [shape: f32[128,8], index: 5, kind: input, shape index: {}]
  %s6 = inlined_call_operand.vmem [shape: f32[8,65], index: 6, kind: input, shape index: {}]
  %s7 = inlined_call_operand.hbm [shape: f32[2,8,8], index: 7, kind: output, shape index: {}]
  %s8 = sld [smem:[#allocation0]]
  $region77: #{tpu_custom_call.1} parent=0
    _
  %s10 = ssub.s32 1, %s8
  %s11 = scalar_select 0, %s10, %s8
  $region1: #{tpu_custom_call.1} parent=0
    #allocation2 [shape = 'u8[65536]{0}', space=vmem, size = 0x10000, scoped, tag = 'input window, operand 1, single buffered']
    #allocation3 [shape = 's32[2]{0}', space=sflag, size = 0x8, scoped, tag = 'scoped memory for tpu_custom_call.1']
    #allocation4 [shape = 's32[2]{0}', space=sflag, size = 0x8, scoped, tag = 'scoped memory for tpu_custom_call.1']
    #allocation5 [shape = 'u8[81920]{0}', space=vmem, size = 0x14000, scoped, tag = 'input window, operand 2, single buffered']
    #allocation6 [shape = 's32[1]{0}', space=sflag, size = 0x4, scoped, tag = 'scoped memory for tpu_custom_call.1']
    #allocation7 [shape = 'u8[131072]{0}', space=vmem, size = 0x20000, scoped, tag = 'input window, operand 3, single buffered']
    #allocation8 [shape = 'u8[32768]{0}', space=vmem, size = 0x8000, scoped, tag = 'input window, operand 4, single buffered']
    #allocation9 [shape = 's32[1]{0}', space=sflag, size = 0x4, scoped, tag = 'scoped memory for tpu_custom_call.1']
    #allocation10 [shape = 'u8[8192]{0}', space=vmem, size = 0x2000, scoped, tag = 'output window, operand 0']
    %12 = vsyncpa [#allocation3], 0
    %13 = vsyncpa [#allocation6], 0
    %14 = vsyncpa [#allocation9], 0
    %15 = vsyncpa [#allocation4], 0
    %s16 = scalar_lea.sflag [#allocation4], 1
    %17 = vsyncpa %s16, 0
    loop: start=0, step=1, limit=4
    $region2: #{tpu_custom_call.1} parent=1 // loop_pre_header
      _
    $region3: #{tpu_custom_call.1} parent=1 // loop_header
      %s19 = sphi 0, %s23
      %p20 = scmp.ge.s32.totalorder %s19, 4
      %s29 = sphi 0, %s31
      %s32 = sphi 0, %s29
      %s33 = sphi 0, %s32
      %s49 = sphi 0, %s33
      %s53 = sphi 0, %s53
      %s55 = sphi 0, %s53
      %s56 = sphi 0, %s55
      %s70 = sphi 0, %s56
      %s74 = sphi 0, %s74
      %s76 = sphi 0, %s74
      %s77 = sphi 0, %s76
      %s91 = sphi 0, %s77
      %s95 = sphi 0, %s95
      %s97 = sphi 0, %s95
      %s98 = sphi 0, %s97
      %s112 = sphi 0, %s98
      %s116 = sphi 0, %s116
      %s118 = sphi 0, %s116
      %s119 = sphi 0, %s118
      %s133 = sphi 0, %s119
      %s137 = sphi 0, %s137
      %s139 = sphi 0, %s137
      %s140 = sphi 0, %s139
      %s154 = sphi 0, %s140
      %s158 = sphi 0, %s158
      %s160 = sphi 0, %s158
      %s161 = sphi 0, %s160
      %s175 = sphi 0, %s161
      %s181 = sphi 0, %s183
      %s184 = sphi 0, %s181
      %s185 = sphi 0, %s184
      %s201 = sphi 0, %s185
    $region4: #{tpu_custom_call.1} parent=1 // loop_header_branch
      %22 = sbr.rel (%p20) target = $region8
    $region5: #{tpu_custom_call.1} parent=1 // loop_body
      %s24 = ssub.s32 %s19, 1
      %s25 = ssub.s32 %s19, 2
      %s26 = sadd.s32 %s19, 1
      %s27 = ssub.s32 %s19, %s26
      %p28 = scmp.eq.s32.totalorder %s27, 0
      %s30 = sadd.s32 %s29, 1
      %s31 = scalar_select %p28, %s29, %s30
      %p34 = pneg %p28
      %p35 = scmp.eq.s32.totalorder %s19, 1
      %p36 = por %p34, %p35
      %p37 = scmp.ne.s32.totalorder %s29, %s32
      %p38 = scmp.eq.s32.totalorder %s19, 0
      %p39 = por %p37, %p38
      %p40 = scmp.ne.s32.totalorder %s29, %s32
      %p41 = scmp.eq.s32.totalorder %s24, 1
      %p42 = por %p40, %p41
      %p43 = scmp.ne.s32.totalorder %s32, %s33
      %p44 = scmp.eq.s32.totalorder %s24, 0
      %p45 = por %p43, %p44
      %p46 = scmp.ne.s32.totalorder %s32, %s33
      %p47 = scmp.eq.s32.totalorder %s25, 1
      %p48 = por %p46, %p47
      %p50 = scmp.ne.s32.totalorder %s33, %s49
      %p51 = scmp.eq.s32.totalorder %s25, 0
      %p52 = por %p50, %p51
      %s54 = sadd.s32 %s53, 1
      %p57 = scmp.eq.s32.totalorder %s19, 1
      %p58 = scmp.ne.s32.totalorder %s53, %s55
      %p59 = scmp.eq.s32.totalorder %s19, 0
      %p60 = por %p58, %p59
      %p61 = scmp.ne.s32.totalorder %s53, %s55
      %p62 = scmp.eq.s32.totalorder %s24, 1
      %p63 = por %p61, %p62
      %p64 = scmp.ne.s32.totalorder %s55, %s56
      %p65 = scmp.eq.s32.totalorder %s24, 0
      %p66 = por %p64, %p65
      %p67 = scmp.ne.s32.totalorder %s55, %s56
      %p68 = scmp.eq.s32.totalorder %s25, 1
      %p69 = por %p67, %p68
      %p71 = scmp.ne.s32.totalorder %s56, %s70
      %p72 = scmp.eq.s32.totalorder %s25, 0
      %p73 = por %p71, %p72
      %s75 = sadd.s32 %s74, 1
      %p78 = scmp.eq.s32.totalorder %s19, 1
      %p79 = scmp.ne.s32.totalorder %s74, %s76
      %p80 = scmp.eq.s32.totalorder %s19, 0
      %p81 = por %p79, %p80
      %p82 = scmp.ne.s32.totalorder %s74, %s76
      %p83 = scmp.eq.s32.totalorder %s24, 1
      %p84 = por %p82, %p83
      %p85 = scmp.ne.s32.totalorder %s76, %s77
      %p86 = scmp.eq.s32.totalorder %s24, 0
      %p87 = por %p85, %p86
      %p88 = scmp.ne.s32.totalorder %s76, %s77
      %p89 = scmp.eq.s32.totalorder %s25, 1
      %p90 = por %p88, %p89
      %p92 = scmp.ne.s32.totalorder %s77, %s91
      %p93 = scmp.eq.s32.totalorder %s25, 0
      %p94 = por %p92, %p93
      %s96 = sadd.s32 %s95, 1
      %p99 = scmp.eq.s32.totalorder %s19, 1
      %p100 = scmp.ne.s32.totalorder %s95, %s97
      %p101 = scmp.eq.s32.totalorder %s19, 0
      %p102 = por %p100, %p101
      %p103 = scmp.ne.s32.totalorder %s95, %s97
      %p104 = scmp.eq.s32.totalorder %s24, 1
      %p105 = por %p103, %p104
      %p106 = scmp.ne.s32.totalorder %s97, %s98
      %p107 = scmp.eq.s32.totalorder %s24, 0
      %p108 = por %p106, %p107
      %p109 = scmp.ne.s32.totalorder %s97, %s98
      %p110 = scmp.eq.s32.totalorder %s25, 1
      %p111 = por %p109, %p110
      %p113 = scmp.ne.s32.totalorder %s98, %s112
      %p114 = scmp.eq.s32.totalorder %s25, 0
      %p115 = por %p113, %p114
      %s117 = sadd.s32 %s116, 1
      %p120 = scmp.eq.s32.totalorder %s19, 1
      %p121 = scmp.ne.s32.totalorder %s116, %s118
      %p122 = scmp.eq.s32.totalorder %s19, 0
      %p123 = por %p121, %p122
      %p124 = scmp.ne.s32.totalorder %s116, %s118
      %p125 = scmp.eq.s32.totalorder %s24, 1
      %p126 = por %p124, %p125
      %p127 = scmp.ne.s32.totalorder %s118, %s119
      %p128 = scmp.eq.s32.totalorder %s24, 0
      %p129 = por %p127, %p128
      %p130 = scmp.ne.s32.totalorder %s118, %s119
      %p131 = scmp.eq.s32.totalorder %s25, 1
      %p132 = por %p130, %p131
      %p134 = scmp.ne.s32.totalorder %s119, %s133
      %p135 = scmp.eq.s32.totalorder %s25, 0
      %p136 = por %p134, %p135
      %s138 = sadd.s32 %s137, 1
      %p141 = scmp.eq.s32.totalorder %s19, 1
      %p142 = scmp.ne.s32.totalorder %s137, %s139
      %p143 = scmp.eq.s32.totalorder %s19, 0
      %p144 = por %p142, %p143
      %p145 = scmp.ne.s32.totalorder %s137, %s139
      %p146 = scmp.eq.s32.totalorder %s24, 1
      %p147 = por %p145, %p146
      %p148 = scmp.ne.s32.totalorder %s139, %s140
      %p149 = scmp.eq.s32.totalorder %s24, 0
      %p150 = por %p148, %p149
      %p151 = scmp.ne.s32.totalorder %s139, %s140
      %p152 = scmp.eq.s32.totalorder %s25, 1
      %p153 = por %p151, %p152
      %p155 = scmp.ne.s32.totalorder %s140, %s154
      %p156 = scmp.eq.s32.totalorder %s25, 0
      %p157 = por %p155, %p156
      %s159 = sadd.s32 %s158, 1
      %p162 = scmp.eq.s32.totalorder %s19, 1
      %p163 = scmp.ne.s32.totalorder %s158, %s160
      %p164 = scmp.eq.s32.totalorder %s19, 0
      %p165 = por %p163, %p164
      %p166 = scmp.ne.s32.totalorder %s158, %s160
      %p167 = scmp.eq.s32.totalorder %s24, 1
      %p168 = por %p166, %p167
      %p169 = scmp.ne.s32.totalorder %s160, %s161
      %p170 = scmp.eq.s32.totalorder %s24, 0
      %p171 = por %p169, %p170
      %p172 = scmp.ne.s32.totalorder %s160, %s161
      %p173 = scmp.eq.s32.totalorder %s25, 1
      %p174 = por %p172, %p173
      %p176 = scmp.ne.s32.totalorder %s161, %s175
      %p177 = scmp.eq.s32.totalorder %s25, 0
      %p178 = por %p176, %p177
      %s179 = ssub.s32 %s19, %s26
      %p180 = scmp.eq.s32.totalorder %s179, 0
      %s182 = sadd.s32 %s181, 1
      %s183 = scalar_select %p180, %s181, %s182
      %p186 = pneg %p180
      %p187 = scmp.eq.s32.totalorder %s19, 1
      %p188 = por %p186, %p187
      %p189 = scmp.ne.s32.totalorder %s181, %s184
      %p190 = scmp.eq.s32.totalorder %s19, 0
      %p191 = por %p189, %p190
      %p192 = scmp.ne.s32.totalorder %s181, %s184
      %p193 = scmp.eq.s32.totalorder %s24, 1
      %p194 = por %p192, %p193
      %p195 = scmp.ne.s32.totalorder %s184, %s185
      %p196 = scmp.eq.s32.totalorder %s24, 0
      %p197 = por %p195, %p196
      %p198 = scmp.ne.s32.totalorder %s184, %s185
      %p199 = scmp.eq.s32.totalorder %s25, 1
      %p200 = por %p198, %p199
      %p202 = scmp.ne.s32.totalorder %s185, %s201
      %p203 = scmp.eq.s32.totalorder %s25, 0
      %p204 = por %p202, %p203
      %p205 = scmp.le.s32.totalorder 1, %s19
      %p206 = scmp.lt.s32.totalorder %s19, 3
      %p207 = pnand %p205, %p206
      %p208 = pneg %p207
      // Predicated region
      $region9: #{tpu_custom_call.1} parent=5 // pred_check
        _
      $region10: #{tpu_custom_call.1} parent=5 // pred_check_branch
        %210 = sbr.rel (%p207) target = $region12
      $region11: #{tpu_custom_call.1} parent=5 // pred_region
        %s211 = ssub.s32 %s19, 1
        // Predicated region
        $region13: #{tpu_custom_call.1} parent=11 // pred_check
          %p212 = pneg %p66
        $region14: #{tpu_custom_call.1} parent=11 // pred_check_branch
          %214 = sbr.rel (%p212) target = $region16
        $region15: #{tpu_custom_call.1} parent=11 // pred_region
          %s216 = ssub.s32 2048, 2048
          %217 = vsyncadd [#allocation3], %s216
          %s218 = sshll.u32 [#allocation2], 4
          %s219 = int_to_ptr.vmem [resolvable:$true] %s218
          %224 = dma.hbm_to_vmem [thread:$0]  %s1, 2048, %s219, [#allocation3], 128, 128, 8
        $region16: #{tpu_custom_call.1} parent=11 // pred_fallthru
          _
        // Predicated region
        $region17: #{tpu_custom_call.1} parent=11 // pred_check
          %p225 = pneg %p87
        $region18: #{tpu_custom_call.1} parent=11 // pred_check_branch
          %227 = sbr.rel (%p225) target = $region20
        $region19: #{tpu_custom_call.1} parent=11 // pred_region
          %s229 = ssub.s32 2560, 2560
          %230 = vsyncadd [#allocation6], %s229
          %s231 = sshll.u32 [#allocation5], 4
          %s232 = int_to_ptr.vmem [resolvable:$true] %s231
          %237 = dma.hbm_to_vmem [thread:$0]  %s2, 2560, %s232, [#allocation6], 64, 64, 4
        $region20: #{tpu_custom_call.1} parent=11 // pred_fallthru
          _
        // Predicated region
        $region21: #{tpu_custom_call.1} parent=11 // pred_check
          %p238 = pneg %p108
        $region22: #{tpu_custom_call.1} parent=11 // pred_check_branch
          %240 = sbr.rel (%p238) target = $region24
        $region23: #{tpu_custom_call.1} parent=11 // pred_region
          %s242 = ssub.s32 4096, 4096
          %243 = vsyncadd [#allocation6], %s242
          %s244 = sshll.u32 [#allocation7], 4
          %s245 = int_to_ptr.vmem [resolvable:$true] %s244
          %250 = dma.hbm_to_vmem [thread:$0]  %s3, 4096, %s245, [#allocation6], 128, 128, 8
        $region24: #{tpu_custom_call.1} parent=11 // pred_fallthru
          _
        // Predicated region
        $region25: #{tpu_custom_call.1} parent=11 // pred_check
          %p251 = pneg %p129
        $region26: #{tpu_custom_call.1} parent=11 // pred_check_branch
          %253 = sbr.rel (%p251) target = $region28
        $region27: #{tpu_custom_call.1} parent=11 // pred_region
          %s255 = ssub.s32 1024, 1024
          %256 = vsyncadd [#allocation9], %s255
          %s257 = sshll.u32 [#allocation8], 4
          %s258 = int_to_ptr.vmem [resolvable:$true] %s257
          %263 = dma.hbm_to_vmem [thread:$0]  %s4, 1024, %s258, [#allocation9], 64, 64, 4
        $region28: #{tpu_custom_call.1} parent=11 // pred_fallthru
          _
        // Predicated region
        $region29: #{tpu_custom_call.1} parent=11 // pred_check
          %p264 = pneg %p150
        $region30: #{tpu_custom_call.1} parent=11 // pred_check_branch
          %266 = sbr.rel (%p264) target = $region32
        $region31: #{tpu_custom_call.1} parent=11 // pred_region
          _
        $region32: #{tpu_custom_call.1} parent=11 // pred_fallthru
          _
        // Predicated region
        $region33: #{tpu_custom_call.1} parent=11 // pred_check
          %p267 = pneg %p171
        $region34: #{tpu_custom_call.1} parent=11 // pred_check_branch
          %269 = sbr.rel (%p267) target = $region36
        $region35: #{tpu_custom_call.1} parent=11 // pred_region
          _
        $region36: #{tpu_custom_call.1} parent=11 // pred_fallthru
          _
      $region12: #{tpu_custom_call.1} parent=5 // pred_fallthru
        _
      %p270 = scmp.lt.s32.totalorder %s19, 2
      // Predicated region
      $region37: #{tpu_custom_call.1} parent=5 // pred_check
        %p271 = pneg %p270
      $region38: #{tpu_custom_call.1} parent=5 // pred_check_branch
        %273 = sbr.rel (%p271) target = $region40
      $region39: #{tpu_custom_call.1} parent=5 // pred_region
        // Predicated region
        $region41: #{tpu_custom_call.1} parent=39 // pred_check
          %p274 = pneg %p39
        $region42: #{tpu_custom_call.1} parent=39 // pred_check_branch
          %276 = sbr.rel (%p274) target = $region44
        $region43: #{tpu_custom_call.1} parent=39 // pred_region
          %p277 = scmp.lt.s32.totalorder %s19, 1
          %s278 = scalar_select %p277, %s19, 1
          %s279 = smul.addr %s278, 8
          %s280 = smul.addr %s279, 8
          %s281 = scalar_lea.vmem %s0, %s280
        $region44: #{tpu_custom_call.1} parent=39 // pred_fallthru
          _
      $region40: #{tpu_custom_call.1} parent=5 // pred_fallthru
        _
      %p282 = scmp.le.s32.totalorder 1, %s19
      %p283 = scmp.lt.s32.totalorder %s19, 3
      %p284 = pnand %p282, %p283
      %p285 = pneg %p284
      // Predicated region
      $region45: #{tpu_custom_call.1} parent=5 // pred_check
        _
      $region46: #{tpu_custom_call.1} parent=5 // pred_check_branch
        %287 = sbr.rel (%p284) target = $region48
      $region47: #{tpu_custom_call.1} parent=5 // pred_region
        %s288 = ssub.s32 %s19, 1
        // Predicated region
        $region49: #{tpu_custom_call.1} parent=47 // pred_check
          %p289 = pneg %p66
        $region50: #{tpu_custom_call.1} parent=47 // pred_check_branch
          %291 = sbr.rel (%p289) target = $region52
        $region51: #{tpu_custom_call.1} parent=47 // pred_region
          %292 = dma.done [#allocation3], 2048
        $region52: #{tpu_custom_call.1} parent=47 // pred_fallthru
          _
        // Predicated region
        $region53: #{tpu_custom_call.1} parent=47 // pred_check
          %p293 = pneg %p87
        $region54: #{tpu_custom_call.1} parent=47 // pred_check_branch
          %295 = sbr.rel (%p293) target = $region56
        $region55: #{tpu_custom_call.1} parent=47 // pred_region
          %296 = dma.done [#allocation6], 2560
        $region56: #{tpu_custom_call.1} parent=47 // pred_fallthru
          _
        // Predicated region
        $region57: #{tpu_custom_call.1} parent=47 // pred_check
          %p297 = pneg %p108
        $region58: #{tpu_custom_call.1} parent=47 // pred_check_branch
          %299 = sbr.rel (%p297) target = $region60
        $region59: #{tpu_custom_call.1} parent=47 // pred_region
          %300 = dma.done [#allocation6], 4096
        $region60: #{tpu_custom_call.1} parent=47 // pred_fallthru
          _
        // Predicated region
        $region61: #{tpu_custom_call.1} parent=47 // pred_check
          %p301 = pneg %p129
        $region62: #{tpu_custom_call.1} parent=47 // pred_check_branch
          %303 = sbr.rel (%p301) target = $region64
        $region63: #{tpu_custom_call.1} parent=47 // pred_region
          %304 = dma.done [#allocation9], 1024
        $region64: #{tpu_custom_call.1} parent=47 // pred_fallthru
          _
        %p305 = scmp.lt.s32.totalorder %s24, 1
        %s306 = scalar_select %p305, %s24, 1
        %s307 = smul.addr %s306, 8
        %s308 = smul.addr %s307, 8
        %s309 = scalar_lea.vmem %s0, %s308
        %p310 = pneg %p45
        %p311 = pneg %p42
        %p312 = pneg %p66
        %p313 = pneg %p63
        %p314 = pneg %p87
        %p315 = pneg %p84
        %p316 = pneg %p108
        %p317 = pneg %p105
        %p318 = pneg %p129
        %p319 = pneg %p126
        %p320 = pneg %p150
        %p321 = pneg %p147
        %p322 = pneg %p171
        %p323 = pneg %p168
        %p324 = pneg %p197
        %p325 = pneg %p194
        %s326 = sand.u32 %s184, 1
        %s327 = scalar_lea.sflag [#allocation4], %s326
        %s328 = sand.u32 %s184, 1
        %s329 = smul.addr %s328, 8
        %s330 = scalar_lea.vmem [#allocation10], %s329
        %p331 = scmp.lt.s32.totalorder %s24, 1
        %s332 = scalar_select %p331, %s24, 1
        %s333 = smul.addr %s332, 8
        %s334 = smul.addr %s333, 8
        %s335 = scalar_lea.vmem %s0, %s334
        %v337 = vld [vmem:[%s335] sm:$0xff]
        %v338 = vld [vmem:[%s335 + $0x8] sm:$0xff]
        %v339 = vld [vmem:[%s335 + $0x10] sm:$0xff]
        %v340 = vld [vmem:[%s335 + $0x18] sm:$0xff]
        %v341 = vld [vmem:[%s335 + $0x20] sm:$0xff]
        %v342 = vld [vmem:[%s335 + $0x28] sm:$0xff]
        %v343 = vld [vmem:[%s335 + $0x30] sm:$0xff]
        %v344 = vld [vmem:[%s335 + $0x38] sm:$0xff]
        %v345 = vld [vmem:[#allocation2] sm:$0xff]
        %v346 = vld [vmem:[#allocation2 + $0x8] sm:$0xff]
        %v347 = vld [vmem:[#allocation2 + $0x10] sm:$0xff]
        %v348 = vld [vmem:[#allocation2 + $0x18] sm:$0xff]
        %v349 = vld [vmem:[#allocation2 + $0x20] sm:$0xff]
        %v350 = vld [vmem:[#allocation2 + $0x28] sm:$0xff]
        %v351 = vld [vmem:[#allocation2 + $0x30] sm:$0xff]
        %v352 = vld [vmem:[#allocation2 + $0x38] sm:$0xff]
        %v353 = vmul.f32 %v337, %v345
        %v354 = vmul.f32 %v338, %v346
        %v355 = vmul.f32 %v339, %v347
        %v356 = vmul.f32 %v340, %v348
        %v357 = vmul.f32 %v341, %v349
        %v358 = vmul.f32 %v342, %v350
        %v359 = vmul.f32 %v343, %v351
        %v360 = vmul.f32 %v344, %v352
        %s361 = scalar_lea.vmem [#allocation2], 64
        %v362 = vld [vmem:[%s361] sm:$0xff]
        %v363 = vld [vmem:[%s361 + $0x8] sm:$0xff]
        %v364 = vld [vmem:[%s361 + $0x10] sm:$0xff]
        %v365 = vld [vmem:[%s361 + $0x18] sm:$0xff]
        %v366 = vld [vmem:[%s361 + $0x20] sm:$0xff]
        %v367 = vld [vmem:[%s361 + $0x28] sm:$0xff]
        %v368 = vld [vmem:[%s361 + $0x30] sm:$0xff]
        %v369 = vld [vmem:[%s361 + $0x38] sm:$0xff]
        %v370 = vadd.f32 %v353, %v362
        %v371 = vadd.f32 %v354, %v363
        %v372 = vadd.f32 %v355, %v364
        %v373 = vadd.f32 %v356, %v365
        %v374 = vadd.f32 %v357, %v366
        %v375 = vadd.f32 %v358, %v367
        %v376 = vadd.f32 %v359, %v368
        %v377 = vadd.f32 %v360, %v369
        %v378 = vld [vmem:[#allocation8] sm:$0xf]
        %v379 = vld [vmem:[#allocation8 + $0x4] sm:$0xf]
        %v380 = vld [vmem:[#allocation8 + $0x8] sm:$0xf]
        %v381 = vld [vmem:[#allocation8 + $0xc] sm:$0xf]
        %v382 = vld [vmem:[#allocation8 + $0x10] sm:$0xf]
        %v383 = vld [vmem:[#allocation8 + $0x14] sm:$0xf]
        %v384 = vld [vmem:[#allocation8 + $0x18] sm:$0xf]
        %v385 = vld [vmem:[#allocation8 + $0x1c] sm:$0xf]
        %v386 = vld [vmem:[#allocation8 + $0x20] sm:$0xf]
        %v387 = vld [vmem:[#allocation8 + $0x24] sm:$0xf]
        %v388 = vld [vmem:[#allocation8 + $0x28] sm:$0xf]
        %v389 = vld [vmem:[#allocation8 + $0x2c] sm:$0xf]
        %v390 = vld [vmem:[#allocation8 + $0x30] sm:$0xf]
        %v391 = vld [vmem:[#allocation8 + $0x34] sm:$0xf]
        %v392 = vld [vmem:[#allocation8 + $0x38] sm:$0xf]
        %v393 = vld [vmem:[#allocation8 + $0x3c] sm:$0xf]
        %v394 = vpack.c.bf16 %v371, %v370
        %v395 = vpack.c.bf16 %v373, %v372
        %v396 = vpack.c.bf16 %v375, %v374
        %v397 = vpack.c.bf16 %v377, %v376
        %v398 = vld [vmem:[#allocation5] sm:$0xf]
        %v399 = vld [vmem:[#allocation5 + $0x4] sm:$0xf]
        %v400 = vld [vmem:[#allocation5 + $0x8] sm:$0xf]
        %v401 = vld [vmem:[#allocation5 + $0xc] sm:$0xf]
        %v402 = vld [vmem:[#allocation5 + $0x10] sm:$0xf]
        %v403 = vld [vmem:[#allocation5 + $0x14] sm:$0xf]
        %v404 = vld [vmem:[#allocation5 + $0x18] sm:$0xf]
        %v405 = vld [vmem:[#allocation5 + $0x1c] sm:$0xf]
        %v414 = vunpack.c.l.b16 %v398
        %v415 = vunpack.c.l.b16 %v399
        %v416 = vunpack.c.l.b16 %v400
        %v417 = vunpack.c.l.b16 %v401
        %v418 = vunpack.c.l.b16 %v402
        %v419 = vunpack.c.l.b16 %v403
        %v420 = vunpack.c.l.b16 %v404
        %v421 = vunpack.c.l.b16 %v405
        %v422 = vpack.c.b16 %v415, %v414
        %v423 = vpack.c.b16 %v417, %v416
        %v424 = vpack.c.b16 %v419, %v418
        %v425 = vpack.c.b16 %v421, %v420
        %vm426 = vcmask 523264
        %v428 = vsel %vm426, %v422, 0
        %v431 = vsel %vm426, %v423, 0
        %v434 = vsel %vm426, %v424, 0
        %v437 = vsel %vm426, %v425, 0
        %439 = vmatprep.subr.bf16.mxu0 0
        %440 = vmatpush1.bf16.msra.mxu0 0
        %441 = vmatprep.subr.bf16.mxu0 0
        %442 = vmatpush1.bf16.msra.mxu0 0
        %443 = vmatprep.subr.bf16.mxu0 0
        %444 = vmatpush1.bf16.msra.mxu0 0
        %445 = vmatprep.subr.bf16.mxu0 0
        %446 = vmatpush1.bf16.msra.mxu0 0
        %447 = vmatprep.subr.bf16.mxu0 0
        %448 = vmatpush1.bf16.msra.mxu0 %v397
        %449 = vmatprep.subr.bf16.mxu0 0
        %450 = vmatpush1.bf16.msra.mxu0 %v396
        %451 = vmatprep.subr.bf16.mxu0 0
        %452 = vmatpush1.bf16.msra.mxu0 %v395
        %453 = vmatprep.subr.bf16.mxu0 0
        %454 = vmatpush1.bf16.msra.mxu0 %v394
        %455 = vmatprep.subr.bf16.mxu0 0
        %456 = vmatpush2.bf16.msra.mxu0 0
        %457 = vmatprep.subr.bf16.mxu0 0
        %458 = vmatpush2.bf16.msra.mxu0 0
        %459 = vmatprep.subr.bf16.mxu0 0
        %460 = vmatpush2.bf16.msra.mxu0 0
        %461 = vmatprep.subr.bf16.mxu0 0
        %462 = vmatpush2.bf16.msra.mxu0 0
        %463 = vmatprep.subr.bf16.mxu0 0
        %464 = vmatpush2.bf16.msra.mxu0 0
        %465 = vmatprep.subr.bf16.mxu0 0
        %466 = vmatpush2.bf16.msra.mxu0 0
        %467 = vmatprep.subr.bf16.mxu0 0
        %468 = vmatpush2.bf16.msra.mxu0 0
        %469 = vmatprep.subr.bf16.mxu0 0
        %470 = vmatpush2.bf16.msra.mxu0 0
        %471 = vmatprep.mubr.bf16.mxu0 0
        %472 = vmatmul.mubr.bf16.gmra.mxu0 %v428
        %v473 = vpop.f32.mrf.mxu0
        %v474 = vadd.f32 0.0, %v473
        %v475 = vpop.f32.mrf.mxu0
        %v476 = vpop.f32.mrf.mxu0
        %v477 = vadd.f32 0.0, %v476
        %v478 = vpop.f32.mrf.mxu0
        %479 = vmatprep.mubr.bf16.mxu0 0
        %480 = vmatmul.mubr.bf16.gmra.mxu0 %v431
        %v481 = vpop.f32.mrf.mxu0
        %v482 = vadd.f32 0.0, %v481
        %v483 = vpop.f32.mrf.mxu0
        %v484 = vpop.f32.mrf.mxu0
        %v485 = vadd.f32 0.0, %v484
        %v486 = vpop.f32.mrf.mxu0
        %487 = vmatprep.mubr.bf16.mxu0 0
        %488 = vmatmul.mubr.bf16.gmra.mxu0 %v434
        %v489 = vpop.f32.mrf.mxu0
        %v490 = vadd.f32 0.0, %v489
        %v491 = vpop.f32.mrf.mxu0
        %v492 = vpop.f32.mrf.mxu0
        %v493 = vadd.f32 0.0, %v492
        %v494 = vpop.f32.mrf.mxu0
        %495 = vmatprep.mubr.bf16.mxu0 0
        %496 = vmatmul.mubr.bf16.gmra.mxu0 %v437
        %v497 = vpop.f32.mrf.mxu0
        %v498 = vadd.f32 0.0, %v497
        %v499 = vpop.f32.mrf.mxu0
        %v500 = vpop.f32.mrf.mxu0
        %v501 = vadd.f32 0.0, %v500
        %v502 = vpop.f32.mrf.mxu0
        %503 = vdwg.mxu0
        %v504 = vpack.c.bf16 %v477, %v474
        %v505 = vpack.c.bf16 %v485, %v482
        %v506 = vpack.c.bf16 %v493, %v490
        %v507 = vpack.c.bf16 %v501, %v498
        %v508 = vld [vmem:[#allocation7] sm:$0xff]
        %v509 = vld [vmem:[#allocation7 + $0x8] sm:$0xff]
        %v510 = vld [vmem:[#allocation7 + $0x10] sm:$0xff]
        %v511 = vld [vmem:[#allocation7 + $0x18] sm:$0xff]
        %v512 = vld [vmem:[#allocation7 + $0x20] sm:$0xff]
        %v513 = vld [vmem:[#allocation7 + $0x28] sm:$0xff]
        %v514 = vld [vmem:[#allocation7 + $0x30] sm:$0xff]
        %v515 = vld [vmem:[#allocation7 + $0x38] sm:$0xff]
        %v532 = vunpack.c.l.b16 %v378
        %v533 = vunpack.c.l.b16 %v379
        %v534 = vunpack.c.l.b16 %v380
        %v535 = vunpack.c.l.b16 %v381
        %v536 = vunpack.c.l.b16 %v382
        %v537 = vunpack.c.l.b16 %v383
        %v538 = vunpack.c.l.b16 %v384
        %v539 = vunpack.c.l.b16 %v385
        %v540 = vunpack.c.l.b16 %v386
        %v541 = vunpack.c.l.b16 %v387
        %v542 = vunpack.c.l.b16 %v388
        %v543 = vunpack.c.l.b16 %v389
        %v544 = vunpack.c.l.b16 %v390
        %v545 = vunpack.c.l.b16 %v391
        %v546 = vunpack.c.l.b16 %v392
        %v547 = vunpack.c.l.b16 %v393
        %v548 = vpack.c.b16 %v533, %v532
        %v549 = vpack.c.b16 %v535, %v534
        %v550 = vpack.c.b16 %v537, %v536
        %v551 = vpack.c.b16 %v539, %v538
        %v552 = vpack.c.b16 %v541, %v540
        %v553 = vpack.c.b16 %v543, %v542
        %v554 = vpack.c.b16 %v545, %v544
        %v555 = vpack.c.b16 %v547, %v546
        %564 = vmatprep.subr.bf16.mxu0 0
        %565 = vmatpush1.bf16.msra.mxu0 %v555
        %566 = vmatprep.subr.bf16.mxu0 0
        %567 = vmatpush1.bf16.msra.mxu0 %v554
        %568 = vmatprep.subr.bf16.mxu0 0
        %569 = vmatpush1.bf16.msra.mxu0 %v553
        %570 = vmatprep.subr.bf16.mxu0 0
        %571 = vmatpush1.bf16.msra.mxu0 %v552
        %572 = vmatprep.subr.bf16.mxu0 0
        %573 = vmatpush1.bf16.msra.mxu0 %v551
        %574 = vmatprep.subr.bf16.mxu0 0
        %575 = vmatpush1.bf16.msra.mxu0 %v550
        %576 = vmatprep.subr.bf16.mxu0 0
        %577 = vmatpush1.bf16.msra.mxu0 %v549
        %578 = vmatprep.subr.bf16.mxu0 0
        %579 = vmatpush1.bf16.msra.mxu0 %v548
        %580 = vmatprep.subr.bf16.mxu0 0
        %581 = vmatpush2.bf16.msra.mxu0 0
        %582 = vmatprep.subr.bf16.mxu0 0
        %583 = vmatpush2.bf16.msra.mxu0 0
        %584 = vmatprep.subr.bf16.mxu0 0
        %585 = vmatpush2.bf16.msra.mxu0 0
        %586 = vmatprep.subr.bf16.mxu0 0
        %587 = vmatpush2.bf16.msra.mxu0 0
        %588 = vmatprep.subr.bf16.mxu0 0
        %589 = vmatpush2.bf16.msra.mxu0 0
        %590 = vmatprep.subr.bf16.mxu0 0
        %591 = vmatpush2.bf16.msra.mxu0 0
        %592 = vmatprep.subr.bf16.mxu0 0
        %593 = vmatpush2.bf16.msra.mxu0 0
        %594 = vmatprep.subr.bf16.mxu0 0
        %595 = vmatpush2.bf16.msra.mxu0 0
        %596 = vmatprep.mubr.bf16.mxu0 0
        %597 = vmatmul.mubr.bf16.gmra.mxu0 %v504
        %v598 = vpop.f32.mrf.mxu0
        %v599 = vadd.f32 %v508, %v598
        %v600 = vpop.f32.mrf.mxu0
        %v601 = vpop.f32.mrf.mxu0
        %v602 = vadd.f32 %v509, %v601
        %v603 = vpop.f32.mrf.mxu0
        %604 = vmatprep.mubr.bf16.mxu0 0
        %605 = vmatmul.mubr.bf16.gmra.mxu0 %v505
        %v606 = vpop.f32.mrf.mxu0
        %v607 = vadd.f32 %v510, %v606
        %v608 = vpop.f32.mrf.mxu0
        %v609 = vpop.f32.mrf.mxu0
        %v610 = vadd.f32 %v511, %v609
        %v611 = vpop.f32.mrf.mxu0
        %612 = vmatprep.mubr.bf16.mxu0 0
        %613 = vmatmul.mubr.bf16.gmra.mxu0 %v506
        %v614 = vpop.f32.mrf.mxu0
        %v615 = vadd.f32 %v512, %v614
        %v616 = vpop.f32.mrf.mxu0
        %v617 = vpop.f32.mrf.mxu0
        %v618 = vadd.f32 %v513, %v617
        %v619 = vpop.f32.mrf.mxu0
        %620 = vmatprep.mubr.bf16.mxu0 0
        %621 = vmatmul.mubr.bf16.gmra.mxu0 %v507
        %v622 = vpop.f32.mrf.mxu0
        %v623 = vadd.f32 %v514, %v622
        %v624 = vpop.f32.mrf.mxu0
        %v625 = vpop.f32.mrf.mxu0
        %v626 = vadd.f32 %v515, %v625
        %v627 = vpop.f32.mrf.mxu0
        %628 = vdwg.mxu0
        %v629 = vmax.f32 %v599, 0.0
        %v630 = vmax.f32 %v602, 0.0
        %v631 = vmax.f32 %v607, 0.0
        %v632 = vmax.f32 %v610, 0.0
        %v633 = vmax.f32 %v615, 0.0
        %v634 = vmax.f32 %v618, 0.0
        %v635 = vmax.f32 %v623, 0.0
        %v636 = vmax.f32 %v626, 0.0
        %v637 = vpack.c.bf16 %v630, %v629
        %v638 = vpack.c.bf16 %v632, %v631
        %v639 = vpack.c.bf16 %v634, %v633
        %v640 = vpack.c.bf16 %v636, %v635
        %s641 = scalar_lea.vmem [#allocation5], 32
        %v642 = vld [vmem:[%s641] sm:$0xf]
        %v643 = vld [vmem:[%s641 + $0x4] sm:$0xf]
        %v644 = vld [vmem:[%s641 + $0x8] sm:$0xf]
        %v645 = vld [vmem:[%s641 + $0xc] sm:$0xf]
        %v646 = vld [vmem:[%s641 + $0x10] sm:$0xf]
        %v647 = vld [vmem:[%s641 + $0x14] sm:$0xf]
        %v648 = vld [vmem:[%s641 + $0x18] sm:$0xf]
        %v649 = vld [vmem:[%s641 + $0x1c] sm:$0xf]
        %v658 = vunpack.c.l.b16 %v642
        %v659 = vunpack.c.l.b16 %v643
        %v660 = vunpack.c.l.b16 %v644
        %v661 = vunpack.c.l.b16 %v645
        %v662 = vunpack.c.l.b16 %v646
        %v663 = vunpack.c.l.b16 %v647
        %v664 = vunpack.c.l.b16 %v648
        %v665 = vunpack.c.l.b16 %v649
        %v666 = vpack.c.b16 %v659, %v658
        %v667 = vpack.c.b16 %v661, %v660
        %v668 = vpack.c.b16 %v663, %v662
        %v669 = vpack.c.b16 %v665, %v664
        %v671 = vsel %vm426, %v666, 0
        %v674 = vsel %vm426, %v667, 0
        %v677 = vsel %vm426, %v668, 0
        %v680 = vsel %vm426, %v669, 0
        %682 = vmatprep.subr.bf16.mxu0 0
        %683 = vmatpush1.bf16.msra.mxu0 0
        %684 = vmatprep.subr.bf16.mxu0 0
        %685 = vmatpush1.bf16.msra.mxu0 0
        %686 = vmatprep.subr.bf16.mxu0 0
        %687 = vmatpush1.bf16.msra.mxu0 0
        %688 = vmatprep.subr.bf16.mxu0 0
        %689 = vmatpush1.bf16.msra.mxu0 0
        %690 = vmatprep.subr.bf16.mxu0 0
        %691 = vmatpush1.bf16.msra.mxu0 %v640
        %692 = vmatprep.subr.bf16.mxu0 0
        %693 = vmatpush1.bf16.msra.mxu0 %v639
        %694 = vmatprep.subr.bf16.mxu0 0
        %695 = vmatpush1.bf16.msra.mxu0 %v638
        %696 = vmatprep.subr.bf16.mxu0 0
        %697 = vmatpush1.bf16.msra.mxu0 %v637
        %698 = vmatprep.subr.bf16.mxu0 0
        %699 = vmatpush2.bf16.msra.mxu0 0
        %700 = vmatprep.subr.bf16.mxu0 0
        %701 = vmatpush2.bf16.msra.mxu0 0
        %702 = vmatprep.subr.bf16.mxu0 0
        %703 = vmatpush2.bf16.msra.mxu0 0
        %704 = vmatprep.subr.bf16.mxu0 0
        %705 = vmatpush2.bf16.msra.mxu0 0
        %706 = vmatprep.subr.bf16.mxu0 0
        %707 = vmatpush2.bf16.msra.mxu0 0
        %708 = vmatprep.subr.bf16.mxu0 0
        %709 = vmatpush2.bf16.msra.mxu0 0
        %710 = vmatprep.subr.bf16.mxu0 0
        %711 = vmatpush2.bf16.msra.mxu0 0
        %712 = vmatprep.subr.bf16.mxu0 0
        %713 = vmatpush2.bf16.msra.mxu0 0
        %714 = vmatprep.mubr.bf16.mxu0 0
        %715 = vmatmul.mubr.bf16.gmra.mxu0 %v671
        %v716 = vpop.f32.mrf.mxu0
        %v717 = vadd.f32 0.0, %v716
        %v718 = vpop.f32.mrf.mxu0
        %v719 = vpop.f32.mrf.mxu0
        %v720 = vadd.f32 0.0, %v719
        %v721 = vpop.f32.mrf.mxu0
        %722 = vmatprep.mubr.bf16.mxu0 0
        %723 = vmatmul.mubr.bf16.gmra.mxu0 %v674
        %v724 = vpop.f32.mrf.mxu0
        %v725 = vadd.f32 0.0, %v724
        %v726 = vpop.f32.mrf.mxu0
        %v727 = vpop.f32.mrf.mxu0
        %v728 = vadd.f32 0.0, %v727
        %v729 = vpop.f32.mrf.mxu0
        %730 = vmatprep.mubr.bf16.mxu0 0
        %731 = vmatmul.mubr.bf16.gmra.mxu0 %v677
        %v732 = vpop.f32.mrf.mxu0
        %v733 = vadd.f32 0.0, %v732
        %v734 = vpop.f32.mrf.mxu0
        %v735 = vpop.f32.mrf.mxu0
        %v736 = vadd.f32 0.0, %v735
        %v737 = vpop.f32.mrf.mxu0
        %738 = vmatprep.mubr.bf16.mxu0 0
        %739 = vmatmul.mubr.bf16.gmra.mxu0 %v680
        %v740 = vpop.f32.mrf.mxu0
        %v741 = vadd.f32 0.0, %v740
        %v742 = vpop.f32.mrf.mxu0
        %v743 = vpop.f32.mrf.mxu0
        %v744 = vadd.f32 0.0, %v743
        %v745 = vpop.f32.mrf.mxu0
        %746 = vdwg.mxu0
        %v747 = vpack.c.bf16 %v720, %v717
        %v748 = vpack.c.bf16 %v728, %v725
        %v749 = vpack.c.bf16 %v736, %v733
        %v750 = vpack.c.bf16 %v744, %v741
        %s751 = scalar_lea.vmem [#allocation7], 64
        %v752 = vld [vmem:[%s751] sm:$0xff]
        %v753 = vld [vmem:[%s751 + $0x8] sm:$0xff]
        %v754 = vld [vmem:[%s751 + $0x10] sm:$0xff]
        %v755 = vld [vmem:[%s751 + $0x18] sm:$0xff]
        %v756 = vld [vmem:[%s751 + $0x20] sm:$0xff]
        %v757 = vld [vmem:[%s751 + $0x28] sm:$0xff]
        %v758 = vld [vmem:[%s751 + $0x30] sm:$0xff]
        %v759 = vld [vmem:[%s751 + $0x38] sm:$0xff]
        %760 = vmatprep.subr.bf16.mxu0 0
        %761 = vmatpush1.bf16.msra.mxu0 %v555
        %762 = vmatprep.subr.bf16.mxu0 0
        %763 = vmatpush1.bf16.msra.mxu0 %v554
        %764 = vmatprep.subr.bf16.mxu0 0
        %765 = vmatpush1.bf16.msra.mxu0 %v553
        %766 = vmatprep.subr.bf16.mxu0 0
        %767 = vmatpush1.bf16.msra.mxu0 %v552
        %768 = vmatprep.subr.bf16.mxu0 0
        %769 = vmatpush1.bf16.msra.mxu0 %v551
        %770 = vmatprep.subr.bf16.mxu0 0
        %771 = vmatpush1.bf16.msra.mxu0 %v550
        %772 = vmatprep.subr.bf16.mxu0 0
        %773 = vmatpush1.bf16.msra.mxu0 %v549
        %774 = vmatprep.subr.bf16.mxu0 0
        %775 = vmatpush1.bf16.msra.mxu0 %v548
        %776 = vmatprep.subr.bf16.mxu0 0
        %777 = vmatpush2.bf16.msra.mxu0 0
        %778 = vmatprep.subr.bf16.mxu0 0
        %779 = vmatpush2.bf16.msra.mxu0 0
        %780 = vmatprep.subr.bf16.mxu0 0
        %781 = vmatpush2.bf16.msra.mxu0 0
        %782 = vmatprep.subr.bf16.mxu0 0
        %783 = vmatpush2.bf16.msra.mxu0 0
        %784 = vmatprep.subr.bf16.mxu0 0
        %785 = vmatpush2.bf16.msra.mxu0 0
        %786 = vmatprep.subr.bf16.mxu0 0
        %787 = vmatpush2.bf16.msra.mxu0 0
        %788 = vmatprep.subr.bf16.mxu0 0
        %789 = vmatpush2.bf16.msra.mxu0 0
        %790 = vmatprep.subr.bf16.mxu0 0
        %791 = vmatpush2.bf16.msra.mxu0 0
        %792 = vmatprep.mubr.bf16.mxu0 0
        %793 = vmatmul.mubr.bf16.gmra.mxu0 %v747
        %v794 = vpop.f32.mrf.mxu0
        %v795 = vadd.f32 %v752, %v794
        %v796 = vpop.f32.mrf.mxu0
        %v797 = vpop.f32.mrf.mxu0
        %v798 = vadd.f32 %v753, %v797
        %v799 = vpop.f32.mrf.mxu0
        %800 = vmatprep.mubr.bf16.mxu0 0
        %801 = vmatmul.mubr.bf16.gmra.mxu0 %v748
        %v802 = vpop.f32.mrf.mxu0
        %v803 = vadd.f32 %v754, %v802
        %v804 = vpop.f32.mrf.mxu0
        %v805 = vpop.f32.mrf.mxu0
        %v806 = vadd.f32 %v755, %v805
        %v807 = vpop.f32.mrf.mxu0
        %808 = vmatprep.mubr.bf16.mxu0 0
        %809 = vmatmul.mubr.bf16.gmra.mxu0 %v749
        %v810 = vpop.f32.mrf.mxu0
        %v811 = vadd.f32 %v756, %v810
        %v812 = vpop.f32.mrf.mxu0
        %v813 = vpop.f32.mrf.mxu0
        %v814 = vadd.f32 %v757, %v813
        %v815 = vpop.f32.mrf.mxu0
        %816 = vmatprep.mubr.bf16.mxu0 0
        %817 = vmatmul.mubr.bf16.gmra.mxu0 %v750
        %v818 = vpop.f32.mrf.mxu0
        %v819 = vadd.f32 %v758, %v818
        %v820 = vpop.f32.mrf.mxu0
        %v821 = vpop.f32.mrf.mxu0
        %v822 = vadd.f32 %v759, %v821
        %v823 = vpop.f32.mrf.mxu0
        %824 = vdwg.mxu0
        %v825 = vadd.f32 %v795, %v629
        %v826 = vadd.f32 %v798, %v630
        %v827 = vadd.f32 %v803, %v631
        %v828 = vadd.f32 %v806, %v632
        %v829 = vadd.f32 %v811, %v633
        %v830 = vadd.f32 %v814, %v634
        %v831 = vadd.f32 %v819, %v635
        %v832 = vadd.f32 %v822, %v636
        %v833 = vmax.f32 %v825, 0.0
        %v834 = vmax.f32 %v826, 0.0
        %v835 = vmax.f32 %v827, 0.0
        %v836 = vmax.f32 %v828, 0.0
        %v837 = vmax.f32 %v829, 0.0
        %v838 = vmax.f32 %v830, 0.0
        %v839 = vmax.f32 %v831, 0.0
        %v840 = vmax.f32 %v832, 0.0
        %v841 = vpack.c.bf16 %v834, %v833
        %v842 = vpack.c.bf16 %v836, %v835
        %v843 = vpack.c.bf16 %v838, %v837
        %v844 = vpack.c.bf16 %v840, %v839
        %s845 = scalar_lea.vmem [#allocation5], 64
        %v846 = vld [vmem:[%s845] sm:$0xf]
        %v847 = vld [vmem:[%s845 + $0x4] sm:$0xf]
        %v848 = vld [vmem:[%s845 + $0x8] sm:$0xf]
        %v849 = vld [vmem:[%s845 + $0xc] sm:$0xf]
        %v850 = vld [vmem:[%s845 + $0x10] sm:$0xf]
        %v851 = vld [vmem:[%s845 + $0x14] sm:$0xf]
        %v852 = vld [vmem:[%s845 + $0x18] sm:$0xf]
        %v853 = vld [vmem:[%s845 + $0x1c] sm:$0xf]
        %v862 = vunpack.c.l.b16 %v846
        %v863 = vunpack.c.l.b16 %v847
        %v864 = vunpack.c.l.b16 %v848
        %v865 = vunpack.c.l.b16 %v849
        %v866 = vunpack.c.l.b16 %v850
        %v867 = vunpack.c.l.b16 %v851
        %v868 = vunpack.c.l.b16 %v852
        %v869 = vunpack.c.l.b16 %v853
        %v870 = vpack.c.b16 %v863, %v862
        %v871 = vpack.c.b16 %v865, %v864
        %v872 = vpack.c.b16 %v867, %v866
        %v873 = vpack.c.b16 %v869, %v868
        %v875 = vsel %vm426, %v870, 0
        %v878 = vsel %vm426, %v871, 0
        %v881 = vsel %vm426, %v872, 0
        %v884 = vsel %vm426, %v873, 0
        %886 = vmatprep.subr.bf16.mxu0 0
        %887 = vmatpush1.bf16.msra.mxu0 0
        %888 = vmatprep.subr.bf16.mxu0 0
        %889 = vmatpush1.bf16.msra.mxu0 0
        %890 = vmatprep.subr.bf16.mxu0 0
        %891 = vmatpush1.bf16.msra.mxu0 0
        %892 = vmatprep.subr.bf16.mxu0 0
        %893 = vmatpush1.bf16.msra.mxu0 0
        %894 = vmatprep.subr.bf16.mxu0 0
        %895 = vmatpush1.bf16.msra.mxu0 %v844
        %896 = vmatprep.subr.bf16.mxu0 0
        %897 = vmatpush1.bf16.msra.mxu0 %v843
        %898 = vmatprep.subr.bf16.mxu0 0
        %899 = vmatpush1.bf16.msra.mxu0 %v842
        %900 = vmatprep.subr.bf16.mxu0 0
        %901 = vmatpush1.bf16.msra.mxu0 %v841
        %902 = vmatprep.subr.bf16.mxu0 0
        %903 = vmatpush2.bf16.msra.mxu0 0
        %904 = vmatprep.subr.bf16.mxu0 0
        %905 = vmatpush2.bf16.msra.mxu0 0
        %906 = vmatprep.subr.bf16.mxu0 0
        %907 = vmatpush2.bf16.msra.mxu0 0
        %908 = vmatprep.subr.bf16.mxu0 0
        %909 = vmatpush2.bf16.msra.mxu0 0
        %910 = vmatprep.subr.bf16.mxu0 0
        %911 = vmatpush2.bf16.msra.mxu0 0
        %912 = vmatprep.subr.bf16.mxu0 0
        %913 = vmatpush2.bf16.msra.mxu0 0
        %914 = vmatprep.subr.bf16.mxu0 0
        %915 = vmatpush2.bf16.msra.mxu0 0
        %916 = vmatprep.subr.bf16.mxu0 0
        %917 = vmatpush2.bf16.msra.mxu0 0
        %918 = vmatprep.mubr.bf16.mxu0 0
        %919 = vmatmul.mubr.bf16.gmra.mxu0 %v875
        %v920 = vpop.f32.mrf.mxu0
        %v921 = vadd.f32 0.0, %v920
        %v922 = vpop.f32.mrf.mxu0
        %v923 = vpop.f32.mrf.mxu0
        %v924 = vadd.f32 0.0, %v923
        %v925 = vpop.f32.mrf.mxu0
        %926 = vmatprep.mubr.bf16.mxu0 0
        %927 = vmatmul.mubr.bf16.gmra.mxu0 %v878
        %v928 = vpop.f32.mrf.mxu0
        %v929 = vadd.f32 0.0, %v928
        %v930 = vpop.f32.mrf.mxu0
        %v931 = vpop.f32.mrf.mxu0
        %v932 = vadd.f32 0.0, %v931
        %v933 = vpop.f32.mrf.mxu0
        %934 = vmatprep.mubr.bf16.mxu0 0
        %935 = vmatmul.mubr.bf16.gmra.mxu0 %v881
        %v936 = vpop.f32.mrf.mxu0
        %v937 = vadd.f32 0.0, %v936
        %v938 = vpop.f32.mrf.mxu0
        %v939 = vpop.f32.mrf.mxu0
        %v940 = vadd.f32 0.0, %v939
        %v941 = vpop.f32.mrf.mxu0
        %942 = vmatprep.mubr.bf16.mxu0 0
        %943 = vmatmul.mubr.bf16.gmra.mxu0 %v884
        %v944 = vpop.f32.mrf.mxu0
        %v945 = vadd.f32 0.0, %v944
        %v946 = vpop.f32.mrf.mxu0
        %v947 = vpop.f32.mrf.mxu0
        %v948 = vadd.f32 0.0, %v947
        %v949 = vpop.f32.mrf.mxu0
        %950 = vdwg.mxu0
        %v951 = vpack.c.bf16 %v924, %v921
        %v952 = vpack.c.bf16 %v932, %v929
        %v953 = vpack.c.bf16 %v940, %v937
        %v954 = vpack.c.bf16 %v948, %v945
        %s955 = scalar_lea.vmem [#allocation7], 128
        %v956 = vld [vmem:[%s955] sm:$0xff]
        %v957 = vld [vmem:[%s955 + $0x8] sm:$0xff]
        %v958 = vld [vmem:[%s955 + $0x10] sm:$0xff]
        %v959 = vld [vmem:[%s955 + $0x18] sm:$0xff]
        %v960 = vld [vmem:[%s955 + $0x20] sm:$0xff]
        %v961 = vld [vmem:[%s955 + $0x28] sm:$0xff]
        %v962 = vld [vmem:[%s955 + $0x30] sm:$0xff]
        %v963 = vld [vmem:[%s955 + $0x38] sm:$0xff]
        %964 = vmatprep.subr.bf16.mxu0 0
        %965 = vmatpush1.bf16.msra.mxu0 %v555
        %966 = vmatprep.subr.bf16.mxu0 0
        %967 = vmatpush1.bf16.msra.mxu0 %v554
        %968 = vmatprep.subr.bf16.mxu0 0
        %969 = vmatpush1.bf16.msra.mxu0 %v553
        %970 = vmatprep.subr.bf16.mxu0 0
        %971 = vmatpush1.bf16.msra.mxu0 %v552
        %972 = vmatprep.subr.bf16.mxu0 0
        %973 = vmatpush1.bf16.msra.mxu0 %v551
        %974 = vmatprep.subr.bf16.mxu0 0
        %975 = vmatpush1.bf16.msra.mxu0 %v550
        %976 = vmatprep.subr.bf16.mxu0 0
        %977 = vmatpush1.bf16.msra.mxu0 %v549
        %978 = vmatprep.subr.bf16.mxu0 0
        %979 = vmatpush1.bf16.msra.mxu0 %v548
        %980 = vmatprep.subr.bf16.mxu0 0
        %981 = vmatpush2.bf16.msra.mxu0 0
        %982 = vmatprep.subr.bf16.mxu0 0
        %983 = vmatpush2.bf16.msra.mxu0 0
        %984 = vmatprep.subr.bf16.mxu0 0
        %985 = vmatpush2.bf16.msra.mxu0 0
        %986 = vmatprep.subr.bf16.mxu0 0
        %987 = vmatpush2.bf16.msra.mxu0 0
        %988 = vmatprep.subr.bf16.mxu0 0
        %989 = vmatpush2.bf16.msra.mxu0 0
        %990 = vmatprep.subr.bf16.mxu0 0
        %991 = vmatpush2.bf16.msra.mxu0 0
        %992 = vmatprep.subr.bf16.mxu0 0
        %993 = vmatpush2.bf16.msra.mxu0 0
        %994 = vmatprep.subr.bf16.mxu0 0
        %995 = vmatpush2.bf16.msra.mxu0 0
        %996 = vmatprep.mubr.bf16.mxu0 0
        %997 = vmatmul.mubr.bf16.gmra.mxu0 %v951
        %v998 = vpop.f32.mrf.mxu0
        %v999 = vadd.f32 %v956, %v998
        %v1000 = vpop.f32.mrf.mxu0
        %v1001 = vpop.f32.mrf.mxu0
        %v1002 = vadd.f32 %v957, %v1001
        %v1003 = vpop.f32.mrf.mxu0
        %1004 = vmatprep.mubr.bf16.mxu0 0
        %1005 = vmatmul.mubr.bf16.gmra.mxu0 %v952
        %v1006 = vpop.f32.mrf.mxu0
        %v1007 = vadd.f32 %v958, %v1006
        %v1008 = vpop.f32.mrf.mxu0
        %v1009 = vpop.f32.mrf.mxu0
        %v1010 = vadd.f32 %v959, %v1009
        %v1011 = vpop.f32.mrf.mxu0
        %1012 = vmatprep.mubr.bf16.mxu0 0
        %1013 = vmatmul.mubr.bf16.gmra.mxu0 %v953
        %v1014 = vpop.f32.mrf.mxu0
        %v1015 = vadd.f32 %v960, %v1014
        %v1016 = vpop.f32.mrf.mxu0
        %v1017 = vpop.f32.mrf.mxu0
        %v1018 = vadd.f32 %v961, %v1017
        %v1019 = vpop.f32.mrf.mxu0
        %1020 = vmatprep.mubr.bf16.mxu0 0
        %1021 = vmatmul.mubr.bf16.gmra.mxu0 %v954
        %v1022 = vpop.f32.mrf.mxu0
        %v1023 = vadd.f32 %v962, %v1022
        %v1024 = vpop.f32.mrf.mxu0
        %v1025 = vpop.f32.mrf.mxu0
        %v1026 = vadd.f32 %v963, %v1025
        %v1027 = vpop.f32.mrf.mxu0
        %1028 = vdwg.mxu0
        %v1029 = vadd.f32 %v999, %v833
        %v1030 = vadd.f32 %v1002, %v834
        %v1031 = vadd.f32 %v1007, %v835
        %v1032 = vadd.f32 %v1010, %v836
        %v1033 = vadd.f32 %v1015, %v837
        %v1034 = vadd.f32 %v1018, %v838
        %v1035 = vadd.f32 %v1023, %v839
        %v1036 = vadd.f32 %v1026, %v840
        %v1037 = vmax.f32 %v1029, 0.0
        %v1038 = vmax.f32 %v1030, 0.0
        %v1039 = vmax.f32 %v1031, 0.0
        %v1040 = vmax.f32 %v1032, 0.0
        %v1041 = vmax.f32 %v1033, 0.0
        %v1042 = vmax.f32 %v1034, 0.0
        %v1043 = vmax.f32 %v1035, 0.0
        %v1044 = vmax.f32 %v1036, 0.0
        %v1045 = vpack.c.bf16 %v1038, %v1037
        %v1046 = vpack.c.bf16 %v1040, %v1039
        %v1047 = vpack.c.bf16 %v1042, %v1041
        %v1048 = vpack.c.bf16 %v1044, %v1043
        %s1049 = scalar_lea.vmem [#allocation5], 96
        %v1050 = vld [vmem:[%s1049] sm:$0xf]
        %v1051 = vld [vmem:[%s1049 + $0x4] sm:$0xf]
        %v1052 = vld [vmem:[%s1049 + $0x8] sm:$0xf]
        %v1053 = vld [vmem:[%s1049 + $0xc] sm:$0xf]
        %v1054 = vld [vmem:[%s1049 + $0x10] sm:$0xf]
        %v1055 = vld [vmem:[%s1049 + $0x14] sm:$0xf]
        %v1056 = vld [vmem:[%s1049 + $0x18] sm:$0xf]
        %v1057 = vld [vmem:[%s1049 + $0x1c] sm:$0xf]
        %v1066 = vunpack.c.l.b16 %v1050
        %v1067 = vunpack.c.l.b16 %v1051
        %v1068 = vunpack.c.l.b16 %v1052
        %v1069 = vunpack.c.l.b16 %v1053
        %v1070 = vunpack.c.l.b16 %v1054
        %v1071 = vunpack.c.l.b16 %v1055
        %v1072 = vunpack.c.l.b16 %v1056
        %v1073 = vunpack.c.l.b16 %v1057
        %v1074 = vpack.c.b16 %v1067, %v1066
        %v1075 = vpack.c.b16 %v1069, %v1068
        %v1076 = vpack.c.b16 %v1071, %v1070
        %v1077 = vpack.c.b16 %v1073, %v1072
        %v1079 = vsel %vm426, %v1074, 0
        %v1082 = vsel %vm426, %v1075, 0
        %v1085 = vsel %vm426, %v1076, 0
        %v1088 = vsel %vm426, %v1077, 0
        %1090 = vmatprep.subr.bf16.mxu0 0
        %1091 = vmatpush1.bf16.msra.mxu0 0
        %1092 = vmatprep.subr.bf16.mxu0 0
        %1093 = vmatpush1.bf16.msra.mxu0 0
        %1094 = vmatprep.subr.bf16.mxu0 0
        %1095 = vmatpush1.bf16.msra.mxu0 0
        %1096 = vmatprep.subr.bf16.mxu0 0
        %1097 = vmatpush1.bf16.msra.mxu0 0
        %1098 = vmatprep.subr.bf16.mxu0 0
        %1099 = vmatpush1.bf16.msra.mxu0 %v1048
        %1100 = vmatprep.subr.bf16.mxu0 0
        %1101 = vmatpush1.bf16.msra.mxu0 %v1047
        %1102 = vmatprep.subr.bf16.mxu0 0
        %1103 = vmatpush1.bf16.msra.mxu0 %v1046
        %1104 = vmatprep.subr.bf16.mxu0 0
        %1105 = vmatpush1.bf16.msra.mxu0 %v1045
        %1106 = vmatprep.subr.bf16.mxu0 0
        %1107 = vmatpush2.bf16.msra.mxu0 0
        %1108 = vmatprep.subr.bf16.mxu0 0
        %1109 = vmatpush2.bf16.msra.mxu0 0
        %1110 = vmatprep.subr.bf16.mxu0 0
        %1111 = vmatpush2.bf16.msra.mxu0 0
        %1112 = vmatprep.subr.bf16.mxu0 0
        %1113 = vmatpush2.bf16.msra.mxu0 0
        %1114 = vmatprep.subr.bf16.mxu0 0
        %1115 = vmatpush2.bf16.msra.mxu0 0
        %1116 = vmatprep.subr.bf16.mxu0 0
        %1117 = vmatpush2.bf16.msra.mxu0 0
        %1118 = vmatprep.subr.bf16.mxu0 0
        %1119 = vmatpush2.bf16.msra.mxu0 0
        %1120 = vmatprep.subr.bf16.mxu0 0
        %1121 = vmatpush2.bf16.msra.mxu0 0
        %1122 = vmatprep.mubr.bf16.mxu0 0
        %1123 = vmatmul.mubr.bf16.gmra.mxu0 %v1079
        %v1124 = vpop.f32.mrf.mxu0
        %v1125 = vadd.f32 0.0, %v1124
        %v1126 = vpop.f32.mrf.mxu0
        %v1127 = vpop.f32.mrf.mxu0
        %v1128 = vadd.f32 0.0, %v1127
        %v1129 = vpop.f32.mrf.mxu0
        %1130 = vmatprep.mubr.bf16.mxu0 0
        %1131 = vmatmul.mubr.bf16.gmra.mxu0 %v1082
        %v1132 = vpop.f32.mrf.mxu0
        %v1133 = vadd.f32 0.0, %v1132
        %v1134 = vpop.f32.mrf.mxu0
        %v1135 = vpop.f32.mrf.mxu0
        %v1136 = vadd.f32 0.0, %v1135
        %v1137 = vpop.f32.mrf.mxu0
        %1138 = vmatprep.mubr.bf16.mxu0 0
        %1139 = vmatmul.mubr.bf16.gmra.mxu0 %v1085
        %v1140 = vpop.f32.mrf.mxu0
        %v1141 = vadd.f32 0.0, %v1140
        %v1142 = vpop.f32.mrf.mxu0
        %v1143 = vpop.f32.mrf.mxu0
        %v1144 = vadd.f32 0.0, %v1143
        %v1145 = vpop.f32.mrf.mxu0
        %1146 = vmatprep.mubr.bf16.mxu0 0
        %1147 = vmatmul.mubr.bf16.gmra.mxu0 %v1088
        %v1148 = vpop.f32.mrf.mxu0
        %v1149 = vadd.f32 0.0, %v1148
        %v1150 = vpop.f32.mrf.mxu0
        %v1151 = vpop.f32.mrf.mxu0
        %v1152 = vadd.f32 0.0, %v1151
        %v1153 = vpop.f32.mrf.mxu0
        %1154 = vdwg.mxu0
        %v1155 = vpack.c.bf16 %v1128, %v1125
        %v1156 = vpack.c.bf16 %v1136, %v1133
        %v1157 = vpack.c.bf16 %v1144, %v1141
        %v1158 = vpack.c.bf16 %v1152, %v1149
        %s1159 = scalar_lea.vmem [#allocation7], 192
        %v1160 = vld [vmem:[%s1159] sm:$0xff]
        %v1161 = vld [vmem:[%s1159 + $0x8] sm:$0xff]
        %v1162 = vld [vmem:[%s1159 + $0x10] sm:$0xff]
        %v1163 = vld [vmem:[%s1159 + $0x18] sm:$0xff]
        %v1164 = vld [vmem:[%s1159 + $0x20] sm:$0xff]
        %v1165 = vld [vmem:[%s1159 + $0x28] sm:$0xff]
        %v1166 = vld [vmem:[%s1159 + $0x30] sm:$0xff]
        %v1167 = vld [vmem:[%s1159 + $0x38] sm:$0xff]
        %1168 = vmatprep.subr.bf16.mxu0 0
        %1169 = vmatpush1.bf16.msra.mxu0 %v555
        %1170 = vmatprep.subr.bf16.mxu0 0
        %1171 = vmatpush1.bf16.msra.mxu0 %v554
        %1172 = vmatprep.subr.bf16.mxu0 0
        %1173 = vmatpush1.bf16.msra.mxu0 %v553
        %1174 = vmatprep.subr.bf16.mxu0 0
        %1175 = vmatpush1.bf16.msra.mxu0 %v552
        %1176 = vmatprep.subr.bf16.mxu0 0
        %1177 = vmatpush1.bf16.msra.mxu0 %v551
        %1178 = vmatprep.subr.bf16.mxu0 0
        %1179 = vmatpush1.bf16.msra.mxu0 %v550
        %1180 = vmatprep.subr.bf16.mxu0 0
        %1181 = vmatpush1.bf16.msra.mxu0 %v549
        %1182 = vmatprep.subr.bf16.mxu0 0
        %1183 = vmatpush1.bf16.msra.mxu0 %v548
        %1184 = vmatprep.subr.bf16.mxu0 0
        %1185 = vmatpush2.bf16.msra.mxu0 0
        %1186 = vmatprep.subr.bf16.mxu0 0
        %1187 = vmatpush2.bf16.msra.mxu0 0
        %1188 = vmatprep.subr.bf16.mxu0 0
        %1189 = vmatpush2.bf16.msra.mxu0 0
        %1190 = vmatprep.subr.bf16.mxu0 0
        %1191 = vmatpush2.bf16.msra.mxu0 0
        %1192 = vmatprep.subr.bf16.mxu0 0
        %1193 = vmatpush2.bf16.msra.mxu0 0
        %1194 = vmatprep.subr.bf16.mxu0 0
        %1195 = vmatpush2.bf16.msra.mxu0 0
        %1196 = vmatprep.subr.bf16.mxu0 0
        %1197 = vmatpush2.bf16.msra.mxu0 0
        %1198 = vmatprep.subr.bf16.mxu0 0
        %1199 = vmatpush2.bf16.msra.mxu0 0
        %1200 = vmatprep.mubr.bf16.mxu0 0
        %1201 = vmatmul.mubr.bf16.gmra.mxu0 %v1155
        %v1202 = vpop.f32.mrf.mxu0
        %v1203 = vadd.f32 %v1160, %v1202
        %v1204 = vpop.f32.mrf.mxu0
        %v1205 = vpop.f32.mrf.mxu0
        %v1206 = vadd.f32 %v1161, %v1205
        %v1207 = vpop.f32.mrf.mxu0
        %1208 = vmatprep.mubr.bf16.mxu0 0
        %1209 = vmatmul.mubr.bf16.gmra.mxu0 %v1156
        %v1210 = vpop.f32.mrf.mxu0
        %v1211 = vadd.f32 %v1162, %v1210
        %v1212 = vpop.f32.mrf.mxu0
        %v1213 = vpop.f32.mrf.mxu0
        %v1214 = vadd.f32 %v1163, %v1213
        %v1215 = vpop.f32.mrf.mxu0
        %1216 = vmatprep.mubr.bf16.mxu0 0
        %1217 = vmatmul.mubr.bf16.gmra.mxu0 %v1157
        %v1218 = vpop.f32.mrf.mxu0
        %v1219 = vadd.f32 %v1164, %v1218
        %v1220 = vpop.f32.mrf.mxu0
        %v1221 = vpop.f32.mrf.mxu0
        %v1222 = vadd.f32 %v1165, %v1221
        %v1223 = vpop.f32.mrf.mxu0
        %1224 = vmatprep.mubr.bf16.mxu0 0
        %1225 = vmatmul.mubr.bf16.gmra.mxu0 %v1158
        %v1226 = vpop.f32.mrf.mxu0
        %v1227 = vadd.f32 %v1166, %v1226
        %v1228 = vpop.f32.mrf.mxu0
        %v1229 = vpop.f32.mrf.mxu0
        %v1230 = vadd.f32 %v1167, %v1229
        %v1231 = vpop.f32.mrf.mxu0
        %1232 = vdwg.mxu0
        %s1233 = scalar_lea.vmem [#allocation5], 128
        %v1234 = vld [vmem:[%s1233] sm:$0xf]
        %v1235 = vld [vmem:[%s1233 + $0x4] sm:$0xf]
        %v1236 = vld [vmem:[%s1233 + $0x8] sm:$0xf]
        %v1237 = vld [vmem:[%s1233 + $0xc] sm:$0xf]
        %v1238 = vld [vmem:[%s1233 + $0x10] sm:$0xf]
        %v1239 = vld [vmem:[%s1233 + $0x14] sm:$0xf]
        %v1240 = vld [vmem:[%s1233 + $0x18] sm:$0xf]
        %v1241 = vld [vmem:[%s1233 + $0x1c] sm:$0xf]
        %v1250 = vunpack.c.l.b16 %v1234
        %v1251 = vunpack.c.l.b16 %v1235
        %v1252 = vunpack.c.l.b16 %v1236
        %v1253 = vunpack.c.l.b16 %v1237
        %v1254 = vunpack.c.l.b16 %v1238
        %v1255 = vunpack.c.l.b16 %v1239
        %v1256 = vunpack.c.l.b16 %v1240
        %v1257 = vunpack.c.l.b16 %v1241
        %v1258 = vpack.c.b16 %v1251, %v1250
        %v1259 = vpack.c.b16 %v1253, %v1252
        %v1260 = vpack.c.b16 %v1255, %v1254
        %v1261 = vpack.c.b16 %v1257, %v1256
        %v1263 = vsel %vm426, %v1258, 0
        %v1266 = vsel %vm426, %v1259, 0
        %v1269 = vsel %vm426, %v1260, 0
        %v1272 = vsel %vm426, %v1261, 0
        %1274 = vmatprep.subr.bf16.mxu0 0
        %1275 = vmatpush1.bf16.msra.mxu0 0
        %1276 = vmatprep.subr.bf16.mxu0 0
        %1277 = vmatpush1.bf16.msra.mxu0 0
        %1278 = vmatprep.subr.bf16.mxu0 0
        %1279 = vmatpush1.bf16.msra.mxu0 0
        %1280 = vmatprep.subr.bf16.mxu0 0
        %1281 = vmatpush1.bf16.msra.mxu0 0
        %1282 = vmatprep.subr.bf16.mxu0 0
        %1283 = vmatpush1.bf16.msra.mxu0 %v1048
        %1284 = vmatprep.subr.bf16.mxu0 0
        %1285 = vmatpush1.bf16.msra.mxu0 %v1047
        %1286 = vmatprep.subr.bf16.mxu0 0
        %1287 = vmatpush1.bf16.msra.mxu0 %v1046
        %1288 = vmatprep.subr.bf16.mxu0 0
        %1289 = vmatpush1.bf16.msra.mxu0 %v1045
        %1290 = vmatprep.subr.bf16.mxu0 0
        %1291 = vmatpush2.bf16.msra.mxu0 0
        %1292 = vmatprep.subr.bf16.mxu0 0
        %1293 = vmatpush2.bf16.msra.mxu0 0
        %1294 = vmatprep.subr.bf16.mxu0 0
        %1295 = vmatpush2.bf16.msra.mxu0 0
        %1296 = vmatprep.subr.bf16.mxu0 0
        %1297 = vmatpush2.bf16.msra.mxu0 0
        %1298 = vmatprep.subr.bf16.mxu0 0
        %1299 = vmatpush2.bf16.msra.mxu0 0
        %1300 = vmatprep.subr.bf16.mxu0 0
        %1301 = vmatpush2.bf16.msra.mxu0 0
        %1302 = vmatprep.subr.bf16.mxu0 0
        %1303 = vmatpush2.bf16.msra.mxu0 0
        %1304 = vmatprep.subr.bf16.mxu0 0
        %1305 = vmatpush2.bf16.msra.mxu0 0
        %1306 = vmatprep.mubr.bf16.mxu0 0
        %1307 = vmatmul.mubr.bf16.gmra.mxu0 %v1263
        %v1308 = vpop.f32.mrf.mxu0
        %v1309 = vadd.f32 0.0, %v1308
        %v1310 = vpop.f32.mrf.mxu0
        %v1311 = vpop.f32.mrf.mxu0
        %v1312 = vadd.f32 0.0, %v1311
        %v1313 = vpop.f32.mrf.mxu0
        %1314 = vmatprep.mubr.bf16.mxu0 0
        %1315 = vmatmul.mubr.bf16.gmra.mxu0 %v1266
        %v1316 = vpop.f32.mrf.mxu0
        %v1317 = vadd.f32 0.0, %v1316
        %v1318 = vpop.f32.mrf.mxu0
        %v1319 = vpop.f32.mrf.mxu0
        %v1320 = vadd.f32 0.0, %v1319
        %v1321 = vpop.f32.mrf.mxu0
        %1322 = vmatprep.mubr.bf16.mxu0 0
        %1323 = vmatmul.mubr.bf16.gmra.mxu0 %v1269
        %v1324 = vpop.f32.mrf.mxu0
        %v1325 = vadd.f32 0.0, %v1324
        %v1326 = vpop.f32.mrf.mxu0
        %v1327 = vpop.f32.mrf.mxu0
        %v1328 = vadd.f32 0.0, %v1327
        %v1329 = vpop.f32.mrf.mxu0
        %1330 = vmatprep.mubr.bf16.mxu0 0
        %1331 = vmatmul.mubr.bf16.gmra.mxu0 %v1272
        %v1332 = vpop.f32.mrf.mxu0
        %v1333 = vadd.f32 0.0, %v1332
        %v1334 = vpop.f32.mrf.mxu0
        %v1335 = vpop.f32.mrf.mxu0
        %v1336 = vadd.f32 0.0, %v1335
        %v1337 = vpop.f32.mrf.mxu0
        %1338 = vdwg.mxu0
        %v1339 = vadd.f32 %v1203, %v1309
        %v1340 = vadd.f32 %v1206, %v1312
        %v1341 = vadd.f32 %v1211, %v1317
        %v1342 = vadd.f32 %v1214, %v1320
        %v1343 = vadd.f32 %v1219, %v1325
        %v1344 = vadd.f32 %v1222, %v1328
        %v1345 = vadd.f32 %v1227, %v1333
        %v1346 = vadd.f32 %v1230, %v1336
        %v1347 = vmax.f32 %v1339, 0.0
        %v1348 = vmax.f32 %v1340, 0.0
        %v1349 = vmax.f32 %v1341, 0.0
        %v1350 = vmax.f32 %v1342, 0.0
        %v1351 = vmax.f32 %v1343, 0.0
        %v1352 = vmax.f32 %v1344, 0.0
        %v1353 = vmax.f32 %v1345, 0.0
        %v1354 = vmax.f32 %v1346, 0.0
        %v1355 = vld [vmem:[%s5] sm:$0xff]
        %v1356 = vld [vmem:[%s5 + $0x8] sm:$0xff]
        %v1357 = vld [vmem:[%s5 + $0x10] sm:$0xff]
        %v1358 = vld [vmem:[%s5 + $0x18] sm:$0xff]
        %v1359 = vld [vmem:[%s5 + $0x20] sm:$0xff]
        %v1360 = vld [vmem:[%s5 + $0x28] sm:$0xff]
        %v1361 = vld [vmem:[%s5 + $0x30] sm:$0xff]
        %v1362 = vld [vmem:[%s5 + $0x38] sm:$0xff]
        %v1363 = vld [vmem:[%s5 + $0x40] sm:$0xff]
        %v1364 = vld [vmem:[%s5 + $0x48] sm:$0xff]
        %v1365 = vld [vmem:[%s5 + $0x50] sm:$0xff]
        %v1366 = vld [vmem:[%s5 + $0x58] sm:$0xff]
        %v1367 = vld [vmem:[%s5 + $0x60] sm:$0xff]
        %v1368 = vld [vmem:[%s5 + $0x68] sm:$0xff]
        %v1369 = vld [vmem:[%s5 + $0x70] sm:$0xff]
        %v1370 = vld [vmem:[%s5 + $0x78] sm:$0xff]
        %1371 = vmatprep.subr.mxu0 0.0
        %1372 = vmatpush1.msra.mxu0 %v1370
        %1373 = vmatprep.subr.mxu0 0.0
        %1374 = vmatpush1.msra.mxu0 %v1369
        %1375 = vmatprep.subr.mxu0 0.0
        %1376 = vmatpush1.msra.mxu0 %v1368
        %1377 = vmatprep.subr.mxu0 0.0
        %1378 = vmatpush1.msra.mxu0 %v1367
        %1379 = vmatprep.subr.mxu0 0.0
        %1380 = vmatpush1.msra.mxu0 %v1366
        %1381 = vmatprep.subr.mxu0 0.0
        %1382 = vmatpush1.msra.mxu0 %v1365
        %1383 = vmatprep.subr.mxu0 0.0
        %1384 = vmatpush1.msra.mxu0 %v1364
        %1385 = vmatprep.subr.mxu0 0.0
        %1386 = vmatpush1.msra.mxu0 %v1363
        %1387 = vmatprep.subr.mxu0 0.0
        %1388 = vmatpush1.msra.mxu0 %v1362
        %1389 = vmatprep.subr.mxu0 0.0
        %1390 = vmatpush1.msra.mxu0 %v1361
        %1391 = vmatprep.subr.mxu0 0.0
        %1392 = vmatpush1.msra.mxu0 %v1360
        %1393 = vmatprep.subr.mxu0 0.0
        %1394 = vmatpush1.msra.mxu0 %v1359
        %1395 = vmatprep.subr.mxu0 0.0
        %1396 = vmatpush1.msra.mxu0 %v1358
        %1397 = vmatprep.subr.mxu0 0.0
        %1398 = vmatpush1.msra.mxu0 %v1357
        %1399 = vmatprep.subr.mxu0 0.0
        %1400 = vmatpush1.msra.mxu0 %v1356
        %1401 = vmatprep.subr.mxu0 0.0
        %1402 = vmatpush1.msra.mxu0 %v1355
        %1403 = vmatprep.subr.mxu0 0.0
        %1404 = vmatpush2.msra.mxu0 0.0
        %1405 = vmatprep.subr.mxu0 0.0
        %1406 = vmatpush2.msra.mxu0 0.0
        %1407 = vmatprep.subr.mxu0 0.0
        %1408 = vmatpush2.msra.mxu0 0.0
        %1409 = vmatprep.subr.mxu0 0.0
        %1410 = vmatpush2.msra.mxu0 0.0
        %1411 = vmatprep.subr.mxu0 0.0
        %1412 = vmatpush2.msra.mxu0 0.0
        %1413 = vmatprep.subr.mxu0 0.0
        %1414 = vmatpush2.msra.mxu0 0.0
        %1415 = vmatprep.subr.mxu0 0.0
        %1416 = vmatpush2.msra.mxu0 0.0
        %1417 = vmatprep.subr.mxu0 0.0
        %1418 = vmatpush2.msra.mxu0 0.0
        %1419 = vmatprep.subr.mxu0 0.0
        %1420 = vmatpush2.msra.mxu0 0.0
        %1421 = vmatprep.subr.mxu0 0.0
        %1422 = vmatpush2.msra.mxu0 0.0
        %1423 = vmatprep.subr.mxu0 0.0
        %1424 = vmatpush2.msra.mxu0 0.0
        %1425 = vmatprep.subr.mxu0 0.0
        %1426 = vmatpush2.msra.mxu0 0.0
        %1427 = vmatprep.subr.mxu0 0.0
        %1428 = vmatpush2.msra.mxu0 0.0
        %1429 = vmatprep.subr.mxu0 0.0
        %1430 = vmatpush2.msra.mxu0 0.0
        %1431 = vmatprep.subr.mxu0 0.0
        %1432 = vmatpush2.msra.mxu0 0.0
        %1433 = vmatprep.subr.mxu0 0.0
        %1434 = vmatpush2.msra.mxu0 0.0
        %1435 = vmatprep.mubr.f32.mxu0 0.0
        %1436 = vmatmul.mubr.f32.gmra.mxu0 %v1347
        %v1437 = vpop.f32.mrf.mxu0
        %v1438 = vadd.f32 0.0, %v1437
        %v1439 = vpop.f32.mrf.mxu0
        %1440 = vmatprep.mubr.f32.mxu0 0.0
        %1441 = vmatmul.mubr.f32.gmra.mxu0 %v1348
        %v1442 = vpop.f32.mrf.mxu0
        %v1443 = vadd.f32 0.0, %v1442
        %v1444 = vpop.f32.mrf.mxu0
        %1445 = vmatprep.mubr.f32.mxu0 0.0
        %1446 = vmatmul.mubr.f32.gmra.mxu0 %v1349
        %v1447 = vpop.f32.mrf.mxu0
        %v1448 = vadd.f32 0.0, %v1447
        %v1449 = vpop.f32.mrf.mxu0
        %1450 = vmatprep.mubr.f32.mxu0 0.0
        %1451 = vmatmul.mubr.f32.gmra.mxu0 %v1350
        %v1452 = vpop.f32.mrf.mxu0
        %v1453 = vadd.f32 0.0, %v1452
        %v1454 = vpop.f32.mrf.mxu0
        %1455 = vmatprep.mubr.f32.mxu0 0.0
        %1456 = vmatmul.mubr.f32.gmra.mxu0 %v1351
        %v1457 = vpop.f32.mrf.mxu0
        %v1458 = vadd.f32 0.0, %v1457
        %v1459 = vpop.f32.mrf.mxu0
        %1460 = vmatprep.mubr.f32.mxu0 0.0
        %1461 = vmatmul.mubr.f32.gmra.mxu0 %v1352
        %v1462 = vpop.f32.mrf.mxu0
        %v1463 = vadd.f32 0.0, %v1462
        %v1464 = vpop.f32.mrf.mxu0
        %1465 = vmatprep.mubr.f32.mxu0 0.0
        %1466 = vmatmul.mubr.f32.gmra.mxu0 %v1353
        %v1467 = vpop.f32.mrf.mxu0
        %v1468 = vadd.f32 0.0, %v1467
        %v1469 = vpop.f32.mrf.mxu0
        %1470 = vmatprep.mubr.f32.mxu0 0.0
        %1471 = vmatmul.mubr.f32.gmra.mxu0 %v1354
        %v1472 = vpop.f32.mrf.mxu0
        %v1473 = vadd.f32 0.0, %v1472
        %v1474 = vpop.f32.mrf.mxu0
        %1475 = vdwg.mxu0
        %v1476 = vld [vmem:[%s6] sm:$0xff]
        %1478 = vset.pattern.permute.xlu0 64
        %1479 = vperm.xlu0 %1478, %v1476
        %v1480 = vpop.permute.xlu0 %1479
        %v1482 = vsel %vm426, %v1476, 0
        %1484 = vmatprep.subr.mxu0 0.0
        %1485 = vmatpush1.msra.mxu0 0.0
        %1486 = vmatprep.subr.mxu0 0.0
        %1487 = vmatpush1.msra.mxu0 0.0
        %1488 = vmatprep.subr.mxu0 0.0
        %1489 = vmatpush1.msra.mxu0 0.0
        %1490 = vmatprep.subr.mxu0 0.0
        %1491 = vmatpush1.msra.mxu0 0.0
        %1492 = vmatprep.subr.mxu0 0.0
        %1493 = vmatpush1.msra.mxu0 0.0
        %1494 = vmatprep.subr.mxu0 0.0
        %1495 = vmatpush1.msra.mxu0 0.0
        %1496 = vmatprep.subr.mxu0 0.0
        %1497 = vmatpush1.msra.mxu0 0.0
        %1498 = vmatprep.subr.mxu0 0.0
        %1499 = vmatpush1.msra.mxu0 0.0
        %1500 = vmatprep.subr.mxu0 0.0
        %1501 = vmatpush1.msra.mxu0 %v1473
        %1502 = vmatprep.subr.mxu0 0.0
        %1503 = vmatpush1.msra.mxu0 %v1468
        %1504 = vmatprep.subr.mxu0 0.0
        %1505 = vmatpush1.msra.mxu0 %v1463
        %1506 = vmatprep.subr.mxu0 0.0
        %1507 = vmatpush1.msra.mxu0 %v1458
        %1508 = vmatprep.subr.mxu0 0.0
        %1509 = vmatpush1.msra.mxu0 %v1453
        %1510 = vmatprep.subr.mxu0 0.0
        %1511 = vmatpush1.msra.mxu0 %v1448
        %1512 = vmatprep.subr.mxu0 0.0
        %1513 = vmatpush1.msra.mxu0 %v1443
        %1514 = vmatprep.subr.mxu0 0.0
        %1515 = vmatpush1.msra.mxu0 %v1438
        %1516 = vmatprep.subr.mxu0 0.0
        %1517 = vmatpush2.msra.mxu0 0.0
        %1518 = vmatprep.subr.mxu0 0.0
        %1519 = vmatpush2.msra.mxu0 0.0
        %1520 = vmatprep.subr.mxu0 0.0
        %1521 = vmatpush2.msra.mxu0 0.0
        %1522 = vmatprep.subr.mxu0 0.0
        %1523 = vmatpush2.msra.mxu0 0.0
        %1524 = vmatprep.subr.mxu0 0.0
        %1525 = vmatpush2.msra.mxu0 0.0
        %1526 = vmatprep.subr.mxu0 0.0
        %1527 = vmatpush2.msra.mxu0 0.0
        %1528 = vmatprep.subr.mxu0 0.0
        %1529 = vmatpush2.msra.mxu0 0.0
        %1530 = vmatprep.subr.mxu0 0.0
        %1531 = vmatpush2.msra.mxu0 0.0
        %1532 = vmatprep.subr.mxu0 0.0
        %1533 = vmatpush2.msra.mxu0 0.0
        %1534 = vmatprep.subr.mxu0 0.0
        %1535 = vmatpush2.msra.mxu0 0.0
        %1536 = vmatprep.subr.mxu0 0.0
        %1537 = vmatpush2.msra.mxu0 0.0
        %1538 = vmatprep.subr.mxu0 0.0
        %1539 = vmatpush2.msra.mxu0 0.0
        %1540 = vmatprep.subr.mxu0 0.0
        %1541 = vmatpush2.msra.mxu0 0.0
        %1542 = vmatprep.subr.mxu0 0.0
        %1543 = vmatpush2.msra.mxu0 0.0
        %1544 = vmatprep.subr.mxu0 0.0
        %1545 = vmatpush2.msra.mxu0 0.0
        %1546 = vmatprep.subr.mxu0 0.0
        %1547 = vmatpush2.msra.mxu0 0.0
        %1548 = vmatprep.mubr.f32.mxu0 0.0
        %1549 = vmatmul.mubr.f32.gmra.mxu0 %v1482
        %v1550 = vpop.f32.mrf.mxu0
        %v1551 = vadd.f32 %v1480, %v1550
        %v1552 = vpop.f32.mrf.mxu0
        %1553 = vdwg.mxu0
        %vm1554 = vcmask 64512
        %1555 = vst.msk [vmem:[%s330] sm:$0xff] %vm1554, %v1551
        %s1556 = sand.u32 %s184, 1
        %s1557 = scalar_lea.sflag [#allocation4], %s1556
        %s1558 = sand.u32 %s184, 1
        %s1559 = smul.addr %s1558, 8
        %s1560 = scalar_lea.vmem [#allocation10], %s1559
        // Predicated region
        $region65: #{tpu_custom_call.1} parent=47 // pred_check
          %p1561 = pneg %p194
        $region66: #{tpu_custom_call.1} parent=47 // pred_check_branch
          %1563 = sbr.rel (%p1561) target = $region68
        $region67: #{tpu_custom_call.1} parent=47 // pred_region
          %s1565 = ssub.s32 128, 128
          %1566 = vsyncadd %s1557, %s1565
          %s1567 = smul.addr %s24, 128
          %s1568 = scalar_lea.hbm %s7, %s1567
          %s1570 = sshll.u32 %s1560, 4
          %s1571 = int_to_ptr.vmem [resolvable:$true] %s1570
          %1573 = dma.vmem_to_hbm [thread:$0]  %s1571, 128, %s1568, %s1557
        $region68: #{tpu_custom_call.1} parent=47 // pred_fallthru
          _
      $region48: #{tpu_custom_call.1} parent=5 // pred_fallthru
        _
      %p1574 = scmp.le.s32.totalorder 2, %s19
      // Predicated region
      $region69: #{tpu_custom_call.1} parent=5 // pred_check
        %p1575 = pneg %p1574
      $region70: #{tpu_custom_call.1} parent=5 // pred_check_branch
        %1577 = sbr.rel (%p1575) target = $region72
      $region71: #{tpu_custom_call.1} parent=5 // pred_region
        %s1578 = ssub.s32 %s19, 2
        // Predicated region
        $region73: #{tpu_custom_call.1} parent=71 // pred_check
          %p1579 = pneg %p200
        $region74: #{tpu_custom_call.1} parent=71 // pred_check_branch
          %1581 = sbr.rel (%p1579) target = $region76
        $region75: #{tpu_custom_call.1} parent=71 // pred_region
          %s1582 = sand.u32 %s185, 1
          %s1583 = scalar_lea.sflag [#allocation4], %s1582
          %s1584 = sand.u32 %s185, 1
          %s1585 = smul.addr %s1584, 8
          %s1586 = scalar_lea.vmem [#allocation10], %s1585
          %1587 = dma.done %s1583, 128
        $region76: #{tpu_custom_call.1} parent=71 // pred_fallthru
          _
      $region72: #{tpu_custom_call.1} parent=5 // pred_fallthru
        _
    $region6: #{tpu_custom_call.1} parent=1 // loop_footer
      %s23 = sadd.s32 1, %s19
    $region7: #{tpu_custom_call.1} parent=1 // loop_footer_branch
      %18 = sbr.rel target = $region3
    $region8: #{tpu_custom_call.1} parent=1 // loop_exit
      _
    %1588 = vsyncpa [#allocation3], 1
    %s1589 = scalar_lea.sflag [#allocation3], 1
    %1590 = vsyncpa %s1589, 1
    %1591 = vsyncpa [#allocation6], 1
    %1592 = vsyncpa [#allocation9], 1
    %1593 = vsyncpa [#allocation4], 1
    %s1594 = scalar_lea.sflag [#allocation4], 1
    %1595 = vsyncpa %s1594, 1

</llo_original>
